<compile_context>
chip_gen: v5e
topology: v5e:2x2
jax: 0.10.0
libtpu: 0.0.40
codegen_flags: <defaults>
</compile_context>

<pallas_src>
import math
from functools import partial

import jax
import jax.numpy as jnp
from jax import lax
from jax.experimental import pallas as pl
from jax.experimental.pallas import tpu as pltpu


# ----------------------------------------------------------------------------
# Pallas kernel: full Attention forward for one batch element.
# ----------------------------------------------------------------------------
def _attn_kernel(x_ref, wqkv_ref, wproj_ref, bproj_ref, lw_ref, lb_ref,
                 bd_mask_ref, out_ref, pad_ref, *, N, C, H, W, num_heads, d,
                 EC, scale, move_dim, gm, ga):
    f32 = jnp.float32
    bf16 = jnp.bfloat16
    nh = num_heads

    x = x_ref[0].astype(bf16)                                     # (N, C)

    # ---- fused q/k/v projection: one (N,C)@(C,3C) MXU pass, f32 accumulation ----
    qkv = jnp.dot(x, wqkv_ref[...], preferred_element_type=f32)   # (N, 3C)
    q = qkv[:, :C]
    k = qkv[:, C:2 * C]
    v = qkv[:, 2 * C:]

    # ---- per-head softmax over k (per-head max: robust, sums >= 1) ----
    ksm_parts = []
    for h in range(nh):
        kh = k[:, h * d:(h + 1) * d]                              # (N, d)
        kmax = jnp.max(kh, axis=-1, keepdims=True)                # per-head max
        ekh = jnp.exp(kh - kmax)
        ssum = jnp.sum(ekh, axis=-1, keepdims=True)               # >= 1 -> approx recip safe
        ksm_parts.append(ekh * pl.reciprocal(ssum, approx=True))
    ksm = ksm_parts[0] if nh == 1 else jnp.concatenate(ksm_parts, axis=-1)   # (N, C)

    # ---- M = softmax(K)^T @ V per head-group (group width <= one MXU tile) ----
    m_parts = []
    for h0 in range(0, nh, gm):
        he = min(nh, h0 + gm)
        mg = lax.dot_general(                                     # (gw, gw) = ksm_g^T v_g
            ksm[:, h0 * d:he * d].astype(bf16),
            v[:, h0 * d:he * d].astype(bf16),
            dimension_numbers=(((0,), (0,)), ((), ())),
            preferred_element_type=f32)
        for li in range(he - h0):                                 # keep diagonal d x d blocks
            m_parts.append(mg[li * d:(li + 1) * d, li * d:(li + 1) * d])
    m = m_parts[0] if len(m_parts) == 1 else jnp.concatenate(m_parts, axis=-1)  # (d, C)

    # ---- _expand_heads: concat(t, torch.roll(t, -move_dim, channel)) ----
    def expand(t):
        rolled = t if move_dim == 0 else jnp.concatenate(
            [t[:, move_dim:], t[:, :move_dim]], axis=-1)
        return jnp.concatenate([t, rolled], axis=-1)

    qe = expand(q)                                                # (N, EC) f32
    me = expand(m) * scale                                        # (d, EC), scale folded in

    # ---- attention: per expanded-head-group block-diagonal matmul ----
    attn_parts = []
    nh_e = 2 * nh
    for h0 in range(0, nh_e, ga):
        he = min(nh_e, h0 + ga)
        g = he - h0
        gw = g * d
        em_g = me[:, h0 * d:he * d]                               # (d, gw)
        em_rows = em_g if g == 1 else jnp.concatenate([em_g] * g, axis=0)   # (gw, gw)
        bd = (em_rows * bd_mask_ref[:gw, :gw]).astype(bf16)       # block-diag RHS
        attn_parts.append(jnp.dot(qe[:, h0 * d:he * d].astype(bf16), bd,
                                  preferred_element_type=f32))    # (N, gw)
    attn = (attn_parts[0] if len(attn_parts) == 1
            else jnp.concatenate(attn_parts, axis=-1))            # (N, EC)

    # ---- LePE: depthwise 3x3 conv (padding=1) on the expanded-q image ----
    # Zero only the 1-pixel border (cheap, done every step so it is megacore
    # safe); interior is fully overwritten.
    zrow = jnp.zeros((1, W + 2, EC), f32)
    zcol = jnp.zeros((H, 1, EC), f32)
    pad_ref[0:1, :, :] = zrow
    pad_ref[H + 1:H + 2, :, :] = zrow
    pad_ref[1:H + 1, 0:1, :] = zcol
    pad_ref[1:H + 1, W + 1:W + 2, :] = zcol
    pad_ref[1:H + 1, 1:W + 1, :] = qe.reshape(H, W, EC)

    acc = jnp.broadcast_to(lb_ref[...].reshape(1, 1, EC), (H, W, EC))  # bias folded
    for di in range(3):
        for dj in range(3):
            tap = lw_ref[di * 3 + dj:di * 3 + dj + 1, :].reshape(1, 1, EC)
            acc = acc + pad_ref[di:di + H, dj:dj + W, :] * tap
    lepe = acc.reshape(N, EC)                                     # (N, EC)

    # ---- output projection ----
    y = (attn + lepe).astype(bf16)
    out = jnp.dot(y, wproj_ref[...], preferred_element_type=f32) + bproj_ref[...]
    out_ref[0] = out.astype(out_ref.dtype)                        # (N, C)


# ----------------------------------------------------------------------------
# Wrapper
# ----------------------------------------------------------------------------
def attention_pallas(x, params, num_heads=8, mxu_dim=128):
    B, N, C = x.shape
    H = int(round(math.sqrt(N)))
    W = H
    assert H * W == N, f"{N} not a square number"
    d = C // num_heads
    EC = 2 * C
    scale = d ** (-0.5)
    move_dim = (d * 1) // 2  # torch: C//num_heads * (r_int - 1) // r_int, r_int = 2

    wq, wkv, wproj, bproj, lw, lb = params
    bf16 = jnp.bfloat16
    # fused q/k/v weight, (in, out) layout -> columns [q | k | v]
    wqkv_b = jnp.concatenate([wq, wkv], axis=1).astype(bf16)      # (C, 3C)
    wproj_b = wproj.astype(bf16)

    # head-group sizes so one block-diagonal matmul fills one MXU tile
    gm = max(1, min(num_heads, mxu_dim // max(d, 1)))             # base heads per group
    ga = max(1, min(2 * num_heads, mxu_dim // max(d, 1)))         # expanded heads per group
    GA = ga * d
    blk = jnp.arange(GA) // d
    bd_mask = (blk[:, None] == blk[None, :]).astype(jnp.float32)  # (GA, GA) block-diag 0/1

    kernel = partial(_attn_kernel, N=N, C=C, H=H, W=W, num_heads=num_heads,
                     d=d, EC=EC, scale=scale, move_dim=move_dim, gm=gm, ga=ga)

    # TODO(synk): mark the constant-index weight/mask operands pl.Buffered(1)
    # and add token tiling (second parallel grid axis) for production shapes.
    grid_spec = pltpu.PrefetchScalarGridSpec(
        num_scalar_prefetch=0,
        grid=(B,),
        in_specs=[
            pl.BlockSpec((1, N, C), lambda b: (b, 0, 0)),    # x (per batch element)
            pl.BlockSpec((C, 3 * C), lambda b: (0, 0)),      # fused Wqkv (in,out), bf16
            pl.BlockSpec((EC, C), lambda b: (0, 0)),         # Wproj, bf16
            pl.BlockSpec((1, C), lambda b: (0, 0)),          # proj bias
            pl.BlockSpec((9, EC), lambda b: (0, 0)),         # LePE depthwise taps
            pl.BlockSpec((1, EC), lambda b: (0, 0)),         # LePE bias
            pl.BlockSpec((GA, GA), lambda b: (0, 0)),        # hoisted block-diag mask
        ],
        out_specs=pl.BlockSpec((1, N, C), lambda b: (b, 0, 0)),
        scratch_shapes=[pltpu.VMEM((H + 2, W + 2, EC), jnp.float32)],
    )

    return pl.pallas_call(
        kernel,
        out_shape=jax.ShapeDtypeStruct((B, N, C), x.dtype),
        grid_spec=grid_spec,
        compiler_params=pltpu.CompilerParams(
            dimension_semantics=("parallel",),
            vmem_limit_bytes=48 * 1024 * 1024,
        ),
    )(x, wqkv_b, wproj_b, bproj, lw, lb, bd_mask)


# ----------------------------------------------------------------------------
# Pure-JAX reference (mirrors the PyTorch forward) for a correctness check.
# ----------------------------------------------------------------------------
def attention_ref(x, params, num_heads=8):
    wq, wkv, wproj, bproj, lw, lb = params
    B, N, C = x.shape
    H = int(round(math.sqrt(N)))
    W = H
    d = C // num_heads
    EC = 2 * C
    scale = d ** (-0.5)
    move_dim = (d * 1) // 2

    kv = x @ wkv                                                    # (B,N,2C)
    kv = jnp.transpose(kv.reshape(B, N, 2, num_heads, d), (2, 0, 3, 1, 4))
    k, v = kv[0], kv[1]                                             # (B,h,N,d)
    q = x @ wq                                                      # (B,N,C)

    def expand_heads(t):                                            # (B,X,C) -> (B,2h,X,d)
        rolled = jnp.concatenate([t[..., move_dim:], t[..., :move_dim]], axis=-1)
        ef = jnp.concatenate([t, rolled], axis=-1)
        Bx, Xx, _ = ef.shape
        return jnp.transpose(ef.reshape(Bx, Xx, 2 * num_heads, d), (0, 2, 1, 3))

    eq = expand_heads(q)                                            # (B,2h,N,d)

    lepe_img = jnp.transpose(eq, (0, 1, 3, 2)).reshape(B, EC, H, W)  # NCHW
    padded = jnp.pad(lepe_img, ((0, 0), (0, 0), (1, 1), (1, 1)))
    w33 = lw.reshape(3, 3, EC)
    lepe_out = jnp.zeros((B, EC, H, W), jnp.float32)
    for di in range(3):
        for dj in range(3):
            lepe_out = lepe_out + padded[:, :, di:di + H, dj:dj + W] * \
                jnp.transpose(w33[di, dj]).reshape(1, EC, 1, 1)
    lepe_out = lepe_out + lb.reshape(1, EC, 1, 1)
    lepe = jnp.transpose(lepe_out.reshape(B, EC, N), (0, 2, 1))      # (B,N,EC)

    ksm = jax.nn.softmax(k, axis=3)
    ktv = jnp.matmul(jnp.swapaxes(ksm, -2, -1), v)                   # (B,h,d,d)
    m = jnp.transpose(ktv, (0, 2, 1, 3)).reshape(B, d, C)
    em = expand_heads(m)                                             # (B,2h,d,d)
    attn = jnp.matmul(eq, em)                                        # (B,2h,N,d)
    xo = jnp.transpose(scale * attn, (0, 2, 1, 3)).reshape(B, N, EC)
    return (xo + lepe) @ wproj + bproj.reshape(1, 1, C)


# ----------------------------------------------------------------------------
if __name__ == "__main__":
    B, C, num_heads = 2, 32, 8
    H = W = 4
    N = H * W
    EC = 2 * C

    key = jax.random.PRNGKey(0)
    ks = jax.random.split(key, 7)
    wq = 0.05 * jax.random.normal(ks[0], (C, C), jnp.float32)
    wkv = 0.05 * jax.random.normal(ks[1], (C, EC), jnp.float32)
    wproj = 0.05 * jax.random.normal(ks[2], (EC, C), jnp.float32)
    bproj = 0.05 * jax.random.normal(ks[3], (1, C), jnp.float32)
    lw = 0.05 * jax.random.normal(ks[4], (9, EC), jnp.float32)   # taps (3*di+dj, c)
    lb = 0.05 * jax.random.normal(ks[5], (1, EC), jnp.float32)
    x = jax.random.normal(ks[6], (B, N, C), jnp.float32)

    params = (wq, wkv, wproj, bproj, lw, lb)

    out = jax.block_until_ready(attention_pallas(x, params, num_heads=num_heads))
    ref = jax.block_until_ready(attention_ref(x, params, num_heads=num_heads))

    assert out.shape == (B, N, C)
    max_err = float(jnp.max(jnp.abs(out - ref)))
    assert max_err < 2e-2, f"mismatch vs reference: max abs err {max_err}"

    print("KERNEL_OK")
</pallas_src>

<mosaic_0001>
module attributes {stable_mosaic.version = 11 : i64} {
  func.func @_attn_kernel(%arg0: i32, %arg1: memref<1x16x32xf32, #tpu.memory_space<vmem>>, %arg2: memref<32x96xbf16, #tpu.memory_space<vmem>>, %arg3: memref<64x32xbf16, #tpu.memory_space<vmem>>, %arg4: memref<1x32xf32, #tpu.memory_space<vmem>>, %arg5: memref<9x64xf32, #tpu.memory_space<vmem>>, %arg6: memref<1x64xf32, #tpu.memory_space<vmem>>, %arg7: memref<64x64xf32, #tpu.memory_space<vmem>>, %arg8: memref<1x16x32xf32, #tpu.memory_space<vmem>>, %arg9: memref<6x6x64xf32, #tpu.memory_space<vmem>>) attributes {dimension_semantics = [#tpu.dimension_semantics<parallel>], iteration_bounds = array<i64: 2>, scalar_prefetch = 0 : i64, scratch_operands = 1 : i64, tpu.core_type = #tpu.core_type<tc>, window_params = [{transform_indices = @transform_0, window_bounds = array<i64: 1, 16, 32>}, {pipeline_mode = #tpu.pipeline_mode<synchronous>, transform_indices = @transform_1, window_bounds = array<i64: 32, 96>}, {pipeline_mode = #tpu.pipeline_mode<synchronous>, transform_indices = @transform_2, window_bounds = array<i64: 64, 32>}, {pipeline_mode = #tpu.pipeline_mode<synchronous>, transform_indices = @transform_3, window_bounds = array<i64: 1, 32>}, {pipeline_mode = #tpu.pipeline_mode<synchronous>, transform_indices = @transform_4, window_bounds = array<i64: 9, 64>}, {pipeline_mode = #tpu.pipeline_mode<synchronous>, transform_indices = @transform_5, window_bounds = array<i64: 1, 64>}, {pipeline_mode = #tpu.pipeline_mode<synchronous>, transform_indices = @transform_6, window_bounds = array<i64: 64, 64>}, {transform_indices = @transform_7, window_bounds = array<i64: 1, 16, 32>}]} {
    %c0 = arith.constant 0 : index
    %c0_0 = arith.constant 0 : index
    %c0_1 = arith.constant 0 : index
    %0 = vector.load %arg1[%c0, %c0_0, %c0_1] : memref<1x16x32xf32, #tpu.memory_space<vmem>>, vector<1x16x32xf32>
    %1 = vector.shape_cast %0 : vector<1x16x32xf32> to vector<16x32xf32>
    %2 = arith.truncf %1 : vector<16x32xf32> to vector<16x32xbf16>
    %c0_2 = arith.constant 0 : index
    %c0_3 = arith.constant 0 : index
    %3 = vector.load %arg2[%c0_2, %c0_3] : memref<32x96xbf16, #tpu.memory_space<vmem>>, vector<32x96xbf16>
    %cst = arith.constant dense<0.000000e+00> : vector<16x96xf32>
    %4 = tpu.matmul %2, %3, %cst {dimension_numbers = #tpu.dot_dimension_numbers<[1], [0], [0], [1], [0, 0, 1, 1], [], []>} : vector<16x32xbf16>, vector<32x96xbf16>, vector<16x96xf32> -> vector<16x96xf32>
    %5 = vector.extract_strided_slice %4 {offsets = [0, 0], sizes = [16, 32], strides = [1, 1]} : vector<16x96xf32> to vector<16x32xf32>
    %6 = vector.extract_strided_slice %4 {offsets = [0, 32], sizes = [16, 32], strides = [1, 1]} : vector<16x96xf32> to vector<16x32xf32>
    %7 = vector.extract_strided_slice %4 {offsets = [0, 64], sizes = [16, 32], strides = [1, 1]} : vector<16x96xf32> to vector<16x32xf32>
    %8 = vector.extract_strided_slice %6 {offsets = [0, 0], sizes = [16, 4], strides = [1, 1]} : vector<16x32xf32> to vector<16x4xf32>
    %cst_4 = arith.constant dense<0xFF800000> : vector<16xf32>
    %9 = vector.multi_reduction <maximumf>, %8, %cst_4 [1] : vector<16x4xf32> to vector<16xf32>
    %10 = vector.shape_cast %9 : vector<16xf32> to vector<16x1xf32>
    %11 = vector.broadcast %10 : vector<16x1xf32> to vector<16x4xf32>
    %12 = arith.subf %8, %11 : vector<16x4xf32>
    %13 = math.exp %12 : vector<16x4xf32>
    %cst_5 = arith.constant dense<0.000000e+00> : vector<16xf32>
    %14 = vector.multi_reduction <add>, %13, %cst_5 [1] : vector<16x4xf32> to vector<16xf32>
    %15 = vector.shape_cast %14 : vector<16xf32> to vector<16x1xf32>
    %16 = tpu.reciprocal %15 {approx = true} : vector<16x1xf32> -> vector<16x1xf32>
    %17 = vector.broadcast %16 : vector<16x1xf32> to vector<16x4xf32>
    %18 = arith.mulf %13, %17 : vector<16x4xf32>
    %19 = vector.extract_strided_slice %6 {offsets = [0, 4], sizes = [16, 4], strides = [1, 1]} : vector<16x32xf32> to vector<16x4xf32>
    %cst_6 = arith.constant dense<0xFF800000> : vector<16xf32>
    %20 = vector.multi_reduction <maximumf>, %19, %cst_6 [1] : vector<16x4xf32> to vector<16xf32>
    %21 = vector.shape_cast %20 : vector<16xf32> to vector<16x1xf32>
    %22 = vector.broadcast %21 : vector<16x1xf32> to vector<16x4xf32>
    %23 = arith.subf %19, %22 : vector<16x4xf32>
    %24 = math.exp %23 : vector<16x4xf32>
    %cst_7 = arith.constant dense<0.000000e+00> : vector<16xf32>
    %25 = vector.multi_reduction <add>, %24, %cst_7 [1] : vector<16x4xf32> to vector<16xf32>
    %26 = vector.shape_cast %25 : vector<16xf32> to vector<16x1xf32>
    %27 = tpu.reciprocal %26 {approx = true} : vector<16x1xf32> -> vector<16x1xf32>
    %28 = vector.broadcast %27 : vector<16x1xf32> to vector<16x4xf32>
    %29 = arith.mulf %24, %28 : vector<16x4xf32>
    %30 = vector.extract_strided_slice %6 {offsets = [0, 8], sizes = [16, 4], strides = [1, 1]} : vector<16x32xf32> to vector<16x4xf32>
    %cst_8 = arith.constant dense<0xFF800000> : vector<16xf32>
    %31 = vector.multi_reduction <maximumf>, %30, %cst_8 [1] : vector<16x4xf32> to vector<16xf32>
    %32 = vector.shape_cast %31 : vector<16xf32> to vector<16x1xf32>
    %33 = vector.broadcast %32 : vector<16x1xf32> to vector<16x4xf32>
    %34 = arith.subf %30, %33 : vector<16x4xf32>
    %35 = math.exp %34 : vector<16x4xf32>
    %cst_9 = arith.constant dense<0.000000e+00> : vector<16xf32>
    %36 = vector.multi_reduction <add>, %35, %cst_9 [1] : vector<16x4xf32> to vector<16xf32>
    %37 = vector.shape_cast %36 : vector<16xf32> to vector<16x1xf32>
    %38 = tpu.reciprocal %37 {approx = true} : vector<16x1xf32> -> vector<16x1xf32>
    %39 = vector.broadcast %38 : vector<16x1xf32> to vector<16x4xf32>
    %40 = arith.mulf %35, %39 : vector<16x4xf32>
    %41 = vector.extract_strided_slice %6 {offsets = [0, 12], sizes = [16, 4], strides = [1, 1]} : vector<16x32xf32> to vector<16x4xf32>
    %cst_10 = arith.constant dense<0xFF800000> : vector<16xf32>
    %42 = vector.multi_reduction <maximumf>, %41, %cst_10 [1] : vector<16x4xf32> to vector<16xf32>
    %43 = vector.shape_cast %42 : vector<16xf32> to vector<16x1xf32>
    %44 = vector.broadcast %43 : vector<16x1xf32> to vector<16x4xf32>
    %45 = arith.subf %41, %44 : vector<16x4xf32>
    %46 = math.exp %45 : vector<16x4xf32>
    %cst_11 = arith.constant dense<0.000000e+00> : vector<16xf32>
    %47 = vector.multi_reduction <add>, %46, %cst_11 [1] : vector<16x4xf32> to vector<16xf32>
    %48 = vector.shape_cast %47 : vector<16xf32> to vector<16x1xf32>
    %49 = tpu.reciprocal %48 {approx = true} : vector<16x1xf32> -> vector<16x1xf32>
    %50 = vector.broadcast %49 : vector<16x1xf32> to vector<16x4xf32>
    %51 = arith.mulf %46, %50 : vector<16x4xf32>
    %52 = vector.extract_strided_slice %6 {offsets = [0, 16], sizes = [16, 4], strides = [1, 1]} : vector<16x32xf32> to vector<16x4xf32>
    %cst_12 = arith.constant dense<0xFF800000> : vector<16xf32>
    %53 = vector.multi_reduction <maximumf>, %52, %cst_12 [1] : vector<16x4xf32> to vector<16xf32>
    %54 = vector.shape_cast %53 : vector<16xf32> to vector<16x1xf32>
    %55 = vector.broadcast %54 : vector<16x1xf32> to vector<16x4xf32>
    %56 = arith.subf %52, %55 : vector<16x4xf32>
    %57 = math.exp %56 : vector<16x4xf32>
    %cst_13 = arith.constant dense<0.000000e+00> : vector<16xf32>
    %58 = vector.multi_reduction <add>, %57, %cst_13 [1] : vector<16x4xf32> to vector<16xf32>
    %59 = vector.shape_cast %58 : vector<16xf32> to vector<16x1xf32>
    %60 = tpu.reciprocal %59 {approx = true} : vector<16x1xf32> -> vector<16x1xf32>
    %61 = vector.broadcast %60 : vector<16x1xf32> to vector<16x4xf32>
    %62 = arith.mulf %57, %61 : vector<16x4xf32>
    %63 = vector.extract_strided_slice %6 {offsets = [0, 20], sizes = [16, 4], strides = [1, 1]} : vector<16x32xf32> to vector<16x4xf32>
    %cst_14 = arith.constant dense<0xFF800000> : vector<16xf32>
    %64 = vector.multi_reduction <maximumf>, %63, %cst_14 [1] : vector<16x4xf32> to vector<16xf32>
    %65 = vector.shape_cast %64 : vector<16xf32> to vector<16x1xf32>
    %66 = vector.broadcast %65 : vector<16x1xf32> to vector<16x4xf32>
    %67 = arith.subf %63, %66 : vector<16x4xf32>
    %68 = math.exp %67 : vector<16x4xf32>
    %cst_15 = arith.constant dense<0.000000e+00> : vector<16xf32>
    %69 = vector.multi_reduction <add>, %68, %cst_15 [1] : vector<16x4xf32> to vector<16xf32>
    %70 = vector.shape_cast %69 : vector<16xf32> to vector<16x1xf32>
    %71 = tpu.reciprocal %70 {approx = true} : vector<16x1xf32> -> vector<16x1xf32>
    %72 = vector.broadcast %71 : vector<16x1xf32> to vector<16x4xf32>
    %73 = arith.mulf %68, %72 : vector<16x4xf32>
    %74 = vector.extract_strided_slice %6 {offsets = [0, 24], sizes = [16, 4], strides = [1, 1]} : vector<16x32xf32> to vector<16x4xf32>
    %cst_16 = arith.constant dense<0xFF800000> : vector<16xf32>
    %75 = vector.multi_reduction <maximumf>, %74, %cst_16 [1] : vector<16x4xf32> to vector<16xf32>
    %76 = vector.shape_cast %75 : vector<16xf32> to vector<16x1xf32>
    %77 = vector.broadcast %76 : vector<16x1xf32> to vector<16x4xf32>
    %78 = arith.subf %74, %77 : vector<16x4xf32>
    %79 = math.exp %78 : vector<16x4xf32>
    %cst_17 = arith.constant dense<0.000000e+00> : vector<16xf32>
    %80 = vector.multi_reduction <add>, %79, %cst_17 [1] : vector<16x4xf32> to vector<16xf32>
    %81 = vector.shape_cast %80 : vector<16xf32> to vector<16x1xf32>
    %82 = tpu.reciprocal %81 {approx = true} : vector<16x1xf32> -> vector<16x1xf32>
    %83 = vector.broadcast %82 : vector<16x1xf32> to vector<16x4xf32>
    %84 = arith.mulf %79, %83 : vector<16x4xf32>
    %85 = vector.extract_strided_slice %6 {offsets = [0, 28], sizes = [16, 4], strides = [1, 1]} : vector<16x32xf32> to vector<16x4xf32>
    %cst_18 = arith.constant dense<0xFF800000> : vector<16xf32>
    %86 = vector.multi_reduction <maximumf>, %85, %cst_18 [1] : vector<16x4xf32> to vector<16xf32>
    %87 = vector.shape_cast %86 : vector<16xf32> to vector<16x1xf32>
    %88 = vector.broadcast %87 : vector<16x1xf32> to vector<16x4xf32>
    %89 = arith.subf %85, %88 : vector<16x4xf32>
    %90 = math.exp %89 : vector<16x4xf32>
    %cst_19 = arith.constant dense<0.000000e+00> : vector<16xf32>
    %91 = vector.multi_reduction <add>, %90, %cst_19 [1] : vector<16x4xf32> to vector<16xf32>
    %92 = vector.shape_cast %91 : vector<16xf32> to vector<16x1xf32>
    %93 = tpu.reciprocal %92 {approx = true} : vector<16x1xf32> -> vector<16x1xf32>
    %94 = vector.broadcast %93 : vector<16x1xf32> to vector<16x4xf32>
    %95 = arith.mulf %90, %94 : vector<16x4xf32>
    %96 = tpu.concatenate %18, %29, %40, %51, %62, %73, %84, %95 in 1 : vector<16x4xf32>, vector<16x4xf32>, vector<16x4xf32>, vector<16x4xf32>, vector<16x4xf32>, vector<16x4xf32>, vector<16x4xf32>, vector<16x4xf32> -> vector<16x32xf32>
    %97 = arith.truncf %96 : vector<16x32xf32> to vector<16x32xbf16>
    %98 = arith.truncf %7 : vector<16x32xf32> to vector<16x32xbf16>
    %cst_20 = arith.constant dense<0.000000e+00> : vector<32x32xf32>
    %99 = tpu.matmul %97, %98, %cst_20 {dimension_numbers = #tpu.dot_dimension_numbers<[0], [0], [1], [1], [0, 1, 1, 1], [], []>} : vector<16x32xbf16>, vector<16x32xbf16>, vector<32x32xf32> -> vector<32x32xf32>
    %100 = vector.extract_strided_slice %99 {offsets = [0, 0], sizes = [4, 4], strides = [1, 1]} : vector<32x32xf32> to vector<4x4xf32>
    %101 = vector.extract_strided_slice %99 {offsets = [4, 4], sizes = [4, 4], strides = [1, 1]} : vector<32x32xf32> to vector<4x4xf32>
    %102 = vector.extract_strided_slice %99 {offsets = [8, 8], sizes = [4, 4], strides = [1, 1]} : vector<32x32xf32> to vector<4x4xf32>
    %103 = vector.extract_strided_slice %99 {offsets = [12, 12], sizes = [4, 4], strides = [1, 1]} : vector<32x32xf32> to vector<4x4xf32>
    %104 = vector.extract_strided_slice %99 {offsets = [16, 16], sizes = [4, 4], strides = [1, 1]} : vector<32x32xf32> to vector<4x4xf32>
    %105 = vector.extract_strided_slice %99 {offsets = [20, 20], sizes = [4, 4], strides = [1, 1]} : vector<32x32xf32> to vector<4x4xf32>
    %106 = vector.extract_strided_slice %99 {offsets = [24, 24], sizes = [4, 4], strides = [1, 1]} : vector<32x32xf32> to vector<4x4xf32>
    %107 = vector.extract_strided_slice %99 {offsets = [28, 28], sizes = [4, 4], strides = [1, 1]} : vector<32x32xf32> to vector<4x4xf32>
    %108 = tpu.concatenate %100, %101, %102, %103, %104, %105, %106, %107 in 1 : vector<4x4xf32>, vector<4x4xf32>, vector<4x4xf32>, vector<4x4xf32>, vector<4x4xf32>, vector<4x4xf32>, vector<4x4xf32>, vector<4x4xf32> -> vector<4x32xf32>
    %109 = vector.extract_strided_slice %5 {offsets = [0, 2], sizes = [16, 30], strides = [1, 1]} : vector<16x32xf32> to vector<16x30xf32>
    %110 = vector.extract_strided_slice %5 {offsets = [0, 0], sizes = [16, 2], strides = [1, 1]} : vector<16x32xf32> to vector<16x2xf32>
    %111 = tpu.concatenate %109, %110 in 1 : vector<16x30xf32>, vector<16x2xf32> -> vector<16x32xf32>
    %112 = tpu.concatenate %5, %111 in 1 : vector<16x32xf32>, vector<16x32xf32> -> vector<16x64xf32>
    %113 = vector.extract_strided_slice %108 {offsets = [0, 2], sizes = [4, 30], strides = [1, 1]} : vector<4x32xf32> to vector<4x30xf32>
    %114 = vector.extract_strided_slice %108 {offsets = [0, 0], sizes = [4, 2], strides = [1, 1]} : vector<4x32xf32> to vector<4x2xf32>
    %115 = tpu.concatenate %113, %114 in 1 : vector<4x30xf32>, vector<4x2xf32> -> vector<4x32xf32>
    %116 = tpu.concatenate %108, %115 in 1 : vector<4x32xf32>, vector<4x32xf32> -> vector<4x64xf32>
    %cst_21 = arith.constant 5.000000e-01 : f32
    %117 = vector.broadcast %cst_21 : f32 to vector<4x64xf32>
    %118 = arith.mulf %116, %117 : vector<4x64xf32>
    %119 = tpu.concatenate %118, %118, %118, %118, %118, %118, %118, %118, %118, %118, %118, %118, %118, %118, %118, %118 in 0 : vector<4x64xf32>, vector<4x64xf32>, vector<4x64xf32>, vector<4x64xf32>, vector<4x64xf32>, vector<4x64xf32>, vector<4x64xf32>, vector<4x64xf32>, vector<4x64xf32>, vector<4x64xf32>, vector<4x64xf32>, vector<4x64xf32>, vector<4x64xf32>, vector<4x64xf32>, vector<4x64xf32>, vector<4x64xf32> -> vector<64x64xf32>
    %c0_22 = arith.constant 0 : index
    %c0_23 = arith.constant 0 : index
    %120 = vector.load %arg7[%c0_22, %c0_23] : memref<64x64xf32, #tpu.memory_space<vmem>>, vector<64x64xf32>
    %121 = arith.mulf %119, %120 : vector<64x64xf32>
    %122 = arith.truncf %121 : vector<64x64xf32> to vector<64x64xbf16>
    %123 = arith.truncf %112 : vector<16x64xf32> to vector<16x64xbf16>
    %cst_24 = arith.constant dense<0.000000e+00> : vector<16x64xf32>
    %124 = tpu.matmul %123, %122, %cst_24 {dimension_numbers = #tpu.dot_dimension_numbers<[1], [0], [0], [1], [0, 0, 1, 1], [], []>} : vector<16x64xbf16>, vector<64x64xbf16>, vector<16x64xf32> -> vector<16x64xf32>
    %cst_25 = arith.constant 0.000000e+00 : f32
    %125 = vector.broadcast %cst_25 : f32 to vector<1x6x64xf32>
    %cst_26 = arith.constant 0.000000e+00 : f32
    %126 = vector.broadcast %cst_26 : f32 to vector<4x1x64xf32>
    %c0_27 = arith.constant 0 : index
    %c0_28 = arith.constant 0 : index
    %c0_29 = arith.constant 0 : index
    %127 = vector.load %arg9[%c0_27, %c0_28, %c0_29] : memref<6x6x64xf32, #tpu.memory_space<vmem>>, vector<1x6x64xf32>
    tpu.vector_store %arg9[%c0_27, %c0_28, %c0_29], %125 {strides = array<i32>} : memref<6x6x64xf32, #tpu.memory_space<vmem>>, vector<1x6x64xf32>,
    %c5 = arith.constant 5 : index
    %c0_30 = arith.constant 0 : index
    %c0_31 = arith.constant 0 : index
    %128 = vector.load %arg9[%c5, %c0_30, %c0_31] : memref<6x6x64xf32, #tpu.memory_space<vmem>>, vector<1x6x64xf32>
    tpu.vector_store %arg9[%c5, %c0_30, %c0_31], %125 {strides = array<i32>} : memref<6x6x64xf32, #tpu.memory_space<vmem>>, vector<1x6x64xf32>,
    %c1 = arith.constant 1 : index
    %c0_32 = arith.constant 0 : index
    %c0_33 = arith.constant 0 : index
    %129 = vector.load %arg9[%c1, %c0_32, %c0_33] : memref<6x6x64xf32, #tpu.memory_space<vmem>>, vector<4x1x64xf32>
    tpu.vector_store %arg9[%c1, %c0_32, %c0_33], %126 {strides = array<i32>} : memref<6x6x64xf32, #tpu.memory_space<vmem>>, vector<4x1x64xf32>,
    %c1_34 = arith.constant 1 : index
    %c5_35 = arith.constant 5 : index
    %c0_36 = arith.constant 0 : index
    %130 = vector.load %arg9[%c1_34, %c5_35, %c0_36] : memref<6x6x64xf32, #tpu.memory_space<vmem>>, vector<4x1x64xf32>
    tpu.vector_store %arg9[%c1_34, %c5_35, %c0_36], %126 {strides = array<i32>} : memref<6x6x64xf32, #tpu.memory_space<vmem>>, vector<4x1x64xf32>,
    %131 = vector.shape_cast %112 : vector<16x64xf32> to vector<4x4x64xf32>
    %c1_37 = arith.constant 1 : index
    %c1_38 = arith.constant 1 : index
    %c0_39 = arith.constant 0 : index
    %132 = vector.load %arg9[%c1_37, %c1_38, %c0_39] : memref<6x6x64xf32, #tpu.memory_space<vmem>>, vector<4x4x64xf32>
    tpu.vector_store %arg9[%c1_37, %c1_38, %c0_39], %131 {strides = array<i32>} : memref<6x6x64xf32, #tpu.memory_space<vmem>>, vector<4x4x64xf32>,
    %c0_40 = arith.constant 0 : index
    %c0_41 = arith.constant 0 : index
    %133 = vector.load %arg6[%c0_40, %c0_41] : memref<1x64xf32, #tpu.memory_space<vmem>>, vector<1x64xf32>
    %134 = vector.shape_cast %133 : vector<1x64xf32> to vector<1x1x64xf32>
    %135 = vector.shape_cast %134 : vector<1x1x64xf32> to vector<1x1x64xf32>
    %136 = vector.broadcast %135 : vector<1x1x64xf32> to vector<4x4x64xf32>
    %c0_42 = arith.constant 0 : index
    %c0_43 = arith.constant 0 : index
    %137 = vector.load %arg5[%c0_42, %c0_43] : memref<9x64xf32, #tpu.memory_space<vmem>>, vector<1x64xf32>
    %138 = vector.shape_cast %137 : vector<1x64xf32> to vector<1x1x64xf32>
    %c0_44 = arith.constant 0 : index
    %c0_45 = arith.constant 0 : index
    %c0_46 = arith.constant 0 : index
    %139 = vector.load %arg9[%c0_44, %c0_45, %c0_46] : memref<6x6x64xf32, #tpu.memory_space<vmem>>, vector<4x4x64xf32>
    %140 = vector.broadcast %138 : vector<1x1x64xf32> to vector<4x4x64xf32>
    %141 = arith.mulf %139, %140 : vector<4x4x64xf32>
    %142 = arith.addf %136, %141 : vector<4x4x64xf32>
    %c1_47 = arith.constant 1 : index
    %c0_48 = arith.constant 0 : index
    %143 = vector.load %arg5[%c1_47, %c0_48] : memref<9x64xf32, #tpu.memory_space<vmem>>, vector<1x64xf32>
    %144 = vector.shape_cast %143 : vector<1x64xf32> to vector<1x1x64xf32>
    %c0_49 = arith.constant 0 : index
    %c1_50 = arith.constant 1 : index
    %c0_51 = arith.constant 0 : index
    %145 = vector.load %arg9[%c0_49, %c1_50, %c0_51] : memref<6x6x64xf32, #tpu.memory_space<vmem>>, vector<4x4x64xf32>
    %146 = vector.broadcast %144 : vector<1x1x64xf32> to vector<4x4x64xf32>
    %147 = arith.mulf %145, %146 : vector<4x4x64xf32>
    %148 = arith.addf %142, %147 : vector<4x4x64xf32>
    %c2 = arith.constant 2 : index
    %c0_52 = arith.constant 0 : index
    %149 = vector.load %arg5[%c2, %c0_52] : memref<9x64xf32, #tpu.memory_space<vmem>>, vector<1x64xf32>
    %150 = vector.shape_cast %149 : vector<1x64xf32> to vector<1x1x64xf32>
    %c0_53 = arith.constant 0 : index
    %c2_54 = arith.constant 2 : index
    %c0_55 = arith.constant 0 : index
    %151 = vector.load %arg9[%c0_53, %c2_54, %c0_55] : memref<6x6x64xf32, #tpu.memory_space<vmem>>, vector<4x4x64xf32>
    %152 = vector.broadcast %150 : vector<1x1x64xf32> to vector<4x4x64xf32>
    %153 = arith.mulf %151, %152 : vector<4x4x64xf32>
    %154 = arith.addf %148, %153 : vector<4x4x64xf32>
    %c3 = arith.constant 3 : index
    %c0_56 = arith.constant 0 : index
    %155 = vector.load %arg5[%c3, %c0_56] : memref<9x64xf32, #tpu.memory_space<vmem>>, vector<1x64xf32>
    %156 = vector.shape_cast %155 : vector<1x64xf32> to vector<1x1x64xf32>
    %c1_57 = arith.constant 1 : index
    %c0_58 = arith.constant 0 : index
    %c0_59 = arith.constant 0 : index
    %157 = vector.load %arg9[%c1_57, %c0_58, %c0_59] : memref<6x6x64xf32, #tpu.memory_space<vmem>>, vector<4x4x64xf32>
    %158 = vector.broadcast %156 : vector<1x1x64xf32> to vector<4x4x64xf32>
    %159 = arith.mulf %157, %158 : vector<4x4x64xf32>
    %160 = arith.addf %154, %159 : vector<4x4x64xf32>
    %c4 = arith.constant 4 : index
    %c0_60 = arith.constant 0 : index
    %161 = vector.load %arg5[%c4, %c0_60] : memref<9x64xf32, #tpu.memory_space<vmem>>, vector<1x64xf32>
    %162 = vector.shape_cast %161 : vector<1x64xf32> to vector<1x1x64xf32>
    %c1_61 = arith.constant 1 : index
    %c1_62 = arith.constant 1 : index
    %c0_63 = arith.constant 0 : index
    %163 = vector.load %arg9[%c1_61, %c1_62, %c0_63] : memref<6x6x64xf32, #tpu.memory_space<vmem>>, vector<4x4x64xf32>
    %164 = vector.broadcast %162 : vector<1x1x64xf32> to vector<4x4x64xf32>
    %165 = arith.mulf %163, %164 : vector<4x4x64xf32>
    %166 = arith.addf %160, %165 : vector<4x4x64xf32>
    %c5_64 = arith.constant 5 : index
    %c0_65 = arith.constant 0 : index
    %167 = vector.load %arg5[%c5_64, %c0_65] : memref<9x64xf32, #tpu.memory_space<vmem>>, vector<1x64xf32>
    %168 = vector.shape_cast %167 : vector<1x64xf32> to vector<1x1x64xf32>
    %c1_66 = arith.constant 1 : index
    %c2_67 = arith.constant 2 : index
    %c0_68 = arith.constant 0 : index
    %169 = vector.load %arg9[%c1_66, %c2_67, %c0_68] : memref<6x6x64xf32, #tpu.memory_space<vmem>>, vector<4x4x64xf32>
    %170 = vector.broadcast %168 : vector<1x1x64xf32> to vector<4x4x64xf32>
    %171 = arith.mulf %169, %170 : vector<4x4x64xf32>
    %172 = arith.addf %166, %171 : vector<4x4x64xf32>
    %c6 = arith.constant 6 : index
    %c0_69 = arith.constant 0 : index
    %173 = vector.load %arg5[%c6, %c0_69] : memref<9x64xf32, #tpu.memory_space<vmem>>, vector<1x64xf32>
    %174 = vector.shape_cast %173 : vector<1x64xf32> to vector<1x1x64xf32>
    %c2_70 = arith.constant 2 : index
    %c0_71 = arith.constant 0 : index
    %c0_72 = arith.constant 0 : index
    %175 = vector.load %arg9[%c2_70, %c0_71, %c0_72] : memref<6x6x64xf32, #tpu.memory_space<vmem>>, vector<4x4x64xf32>
    %176 = vector.broadcast %174 : vector<1x1x64xf32> to vector<4x4x64xf32>
    %177 = arith.mulf %175, %176 : vector<4x4x64xf32>
    %178 = arith.addf %172, %177 : vector<4x4x64xf32>
    %c7 = arith.constant 7 : index
    %c0_73 = arith.constant 0 : index
    %179 = vector.load %arg5[%c7, %c0_73] : memref<9x64xf32, #tpu.memory_space<vmem>>, vector<1x64xf32>
    %180 = vector.shape_cast %179 : vector<1x64xf32> to vector<1x1x64xf32>
    %c2_74 = arith.constant 2 : index
    %c1_75 = arith.constant 1 : index
    %c0_76 = arith.constant 0 : index
    %181 = vector.load %arg9[%c2_74, %c1_75, %c0_76] : memref<6x6x64xf32, #tpu.memory_space<vmem>>, vector<4x4x64xf32>
    %182 = vector.broadcast %180 : vector<1x1x64xf32> to vector<4x4x64xf32>
    %183 = arith.mulf %181, %182 : vector<4x4x64xf32>
    %184 = arith.addf %178, %183 : vector<4x4x64xf32>
    %c8 = arith.constant 8 : index
    %c0_77 = arith.constant 0 : index
    %185 = vector.load %arg5[%c8, %c0_77] : memref<9x64xf32, #tpu.memory_space<vmem>>, vector<1x64xf32>
    %186 = vector.shape_cast %185 : vector<1x64xf32> to vector<1x1x64xf32>
    %c2_78 = arith.constant 2 : index
    %c2_79 = arith.constant 2 : index
    %c0_80 = arith.constant 0 : index
    %187 = vector.load %arg9[%c2_78, %c2_79, %c0_80] : memref<6x6x64xf32, #tpu.memory_space<vmem>>, vector<4x4x64xf32>
    %188 = vector.broadcast %186 : vector<1x1x64xf32> to vector<4x4x64xf32>
    %189 = arith.mulf %187, %188 : vector<4x4x64xf32>
    %190 = arith.addf %184, %189 : vector<4x4x64xf32>
    %191 = vector.shape_cast %190 : vector<4x4x64xf32> to vector<16x64xf32>
    %192 = arith.addf %124, %191 : vector<16x64xf32>
    %193 = arith.truncf %192 : vector<16x64xf32> to vector<16x64xbf16>
    %c0_81 = arith.constant 0 : index
    %c0_82 = arith.constant 0 : index
    %194 = vector.load %arg3[%c0_81, %c0_82] : memref<64x32xbf16, #tpu.memory_space<vmem>>, vector<64x32xbf16>
    %cst_83 = arith.constant dense<0.000000e+00> : vector<16x32xf32>
    %195 = tpu.matmul %193, %194, %cst_83 {dimension_numbers = #tpu.dot_dimension_numbers<[1], [0], [0], [1], [0, 0, 1, 1], [], []>} : vector<16x64xbf16>, vector<64x32xbf16>, vector<16x32xf32> -> vector<16x32xf32>
    %c0_84 = arith.constant 0 : index
    %c0_85 = arith.constant 0 : index
    %196 = vector.load %arg4[%c0_84, %c0_85] : memref<1x32xf32, #tpu.memory_space<vmem>>, vector<1x32xf32>
    %197 = vector.broadcast %196 : vector<1x32xf32> to vector<16x32xf32>
    %198 = arith.addf %195, %197 : vector<16x32xf32>
    %c0_86 = arith.constant 0 : index
    %c0_87 = arith.constant 0 : index
    %c0_88 = arith.constant 0 : index
    %199 = vector.load %arg8[%c0_86, %c0_87, %c0_88] : memref<1x16x32xf32, #tpu.memory_space<vmem>>, vector<1x16x32xf32>
    %200 = vector.shape_cast %199 : vector<1x16x32xf32> to vector<16x32xf32>
    %201 = vector.shape_cast %198 : vector<16x32xf32> to vector<1x16x32xf32>
    tpu.vector_store %arg8[%c0_86, %c0_87, %c0_88], %201 {strides = array<i32>} : memref<1x16x32xf32, #tpu.memory_space<vmem>>, vector<1x16x32xf32>,
    return
  }
  func.func @transform_0(%arg0: i32) -> (i32, i32, i32) {
    %c0_i32 = arith.constant 0 : i32
    %c0_i32_0 = arith.constant 0 : i32
    %c0_i32_1 = arith.constant 0 : i32
    return %arg0, %c0_i32, %c0_i32_0 : i32, i32, i32
  }
  func.func @transform_1(%arg0: i32) -> (i32, i32) {
    %c0_i32 = arith.constant 0 : i32
    %c0_i32_0 = arith.constant 0 : i32
    %c0_i32_1 = arith.constant 0 : i32
    return %c0_i32, %c0_i32_0 : i32, i32
  }
  func.func @transform_2(%arg0: i32) -> (i32, i32) {
    %c0_i32 = arith.constant 0 : i32
    %c0_i32_0 = arith.constant 0 : i32
    %c0_i32_1 = arith.constant 0 : i32
    return %c0_i32, %c0_i32_0 : i32, i32
  }
  func.func @transform_3(%arg0: i32) -> (i32, i32) {
    %c0_i32 = arith.constant 0 : i32
    %c0_i32_0 = arith.constant 0 : i32
    %c0_i32_1 = arith.constant 0 : i32
    return %c0_i32, %c0_i32_0 : i32, i32
  }
  func.func @transform_4(%arg0: i32) -> (i32, i32) {
    %c0_i32 = arith.constant 0 : i32
    %c0_i32_0 = arith.constant 0 : i32
    %c0_i32_1 = arith.constant 0 : i32
    return %c0_i32, %c0_i32_0 : i32, i32
  }
  func.func @transform_5(%arg0: i32) -> (i32, i32) {
    %c0_i32 = arith.constant 0 : i32
    %c0_i32_0 = arith.constant 0 : i32
    %c0_i32_1 = arith.constant 0 : i32
    return %c0_i32, %c0_i32_0 : i32, i32
  }
  func.func @transform_6(%arg0: i32) -> (i32, i32) {
    %c0_i32 = arith.constant 0 : i32
    %c0_i32_0 = arith.constant 0 : i32
    %c0_i32_1 = arith.constant 0 : i32
    return %c0_i32, %c0_i32_0 : i32, i32
  }
  func.func @transform_7(%arg0: i32) -> (i32, i32, i32) {
    %c0_i32 = arith.constant 0 : i32
    %c0_i32_0 = arith.constant 0 : i32
    %c0_i32_1 = arith.constant 0 : i32
    return %arg0, %c0_i32, %c0_i32_0 : i32, i32, i32
  }
}

</mosaic_0001>

<llo_original>
// kernel: tpu_custom_call.1
$region0: #{tpu_custom_call.1}
  #allocation0 [shape = 'u32[]', space=smem, size = 0x4, offset = 0x4, fixed_abs, tag = 'smem constant byte address 0x4 - core index']
  #allocation1 [shape = 'u32[72,128]{1,0:T(1,128)}', space=vmem, size = 0x9000, scoped, tag = 'internal scratch']
  #allocation2 [shape = 'f32[6,6,64]{2,1,0:T(8,128)}', space=vmem, size = 0x6000, scoped, tag = 'scratch operand']
  %s0 = inlined_call_operand.vmem [shape: f32[2,16,32], index: 0, kind: input, shape index: {}]
  %s1 = inlined_call_operand.vmem [shape: bf16[32,96], index: 1, kind: input, shape index: {}]
  %s2 = inlined_call_operand.vmem [shape: bf16[64,32], index: 2, kind: input, shape index: {}]
  %s3 = inlined_call_operand.vmem [shape: f32[1,32], index: 3, kind: input, shape index: {}]
  %s4 = inlined_call_operand.hbm [shape: f32[9,64], index: 4, kind: input, shape index: {}]
  %s5 = inlined_call_operand.vmem [shape: f32[1,64], index: 5, kind: input, shape index: {}]
  %s6 = inlined_call_operand.hbm [shape: f32[64,64], index: 6, kind: input, shape index: {}]
  %s7 = inlined_call_operand.hbm [shape: f32[2,16,32], index: 7, kind: output, shape index: {}]
  %s8 = sld [smem:[#allocation0]]
  $region69: #{tpu_custom_call.1} parent=0
    _
  %s10 = ssub.s32 1, %s8
  %s11 = scalar_select 0, %s10, %s8
  $region1: #{tpu_custom_call.1} parent=0
    #allocation3 [shape = 'u8[8192]{0}', space=vmem, size = 0x2000, scoped, tag = 'input window, operand 4, single buffered']
    #allocation4 [shape = 's32[2]{0}', space=sflag, size = 0x8, scoped, tag = 'scoped memory for tpu_custom_call.1']
    #allocation5 [shape = 's32[2]{0}', space=sflag, size = 0x8, scoped, tag = 'scoped memory for tpu_custom_call.1']
    #allocation6 [shape = 'u8[32768]{0}', space=vmem, size = 0x8000, scoped, tag = 'input window, operand 6, single buffered']
    #allocation7 [shape = 's32[1]{0}', space=sflag, size = 0x4, scoped, tag = 'scoped memory for tpu_custom_call.1']
    #allocation8 [shape = 'u8[16384]{0}', space=vmem, size = 0x4000, scoped, tag = 'output window, operand 0']
    %12 = vsyncpa [#allocation4], 0
    %13 = vsyncpa [#allocation7], 0
    %14 = vsyncpa [#allocation5], 0
    %s15 = scalar_lea.sflag [#allocation5], 1
    %16 = vsyncpa %s15, 0
    loop: start=0, step=1, limit=4
    $region2: #{tpu_custom_call.1} parent=1 // loop_pre_header
      _
    $region3: #{tpu_custom_call.1} parent=1 // loop_header
      %s18 = sphi 0, %s22
      %p19 = scmp.ge.s32.totalorder %s18, 4
      %s28 = sphi 0, %s30
      %s31 = sphi 0, %s28
      %s32 = sphi 0, %s31
      %s48 = sphi 0, %s32
      %s52 = sphi 0, %s52
      %s54 = sphi 0, %s52
      %s55 = sphi 0, %s54
      %s69 = sphi 0, %s55
      %s73 = sphi 0, %s73
      %s75 = sphi 0, %s73
      %s76 = sphi 0, %s75
      %s90 = sphi 0, %s76
      %s94 = sphi 0, %s94
      %s96 = sphi 0, %s94
      %s97 = sphi 0, %s96
      %s111 = sphi 0, %s97
      %s115 = sphi 0, %s115
      %s117 = sphi 0, %s115
      %s118 = sphi 0, %s117
      %s132 = sphi 0, %s118
      %s136 = sphi 0, %s136
      %s138 = sphi 0, %s136
      %s139 = sphi 0, %s138
      %s153 = sphi 0, %s139
      %s157 = sphi 0, %s157
      %s159 = sphi 0, %s157
      %s160 = sphi 0, %s159
      %s174 = sphi 0, %s160
      %s180 = sphi 0, %s182
      %s183 = sphi 0, %s180
      %s184 = sphi 0, %s183
      %s200 = sphi 0, %s184
    $region4: #{tpu_custom_call.1} parent=1 // loop_header_branch
      %21 = sbr.rel (%p19) target = $region8
    $region5: #{tpu_custom_call.1} parent=1 // loop_body
      %s23 = ssub.s32 %s18, 1
      %s24 = ssub.s32 %s18, 2
      %s25 = sadd.s32 %s18, 1
      %s26 = ssub.s32 %s18, %s25
      %p27 = scmp.eq.s32.totalorder %s26, 0
      %s29 = sadd.s32 %s28, 1
      %s30 = scalar_select %p27, %s28, %s29
      %p33 = pneg %p27
      %p34 = scmp.eq.s32.totalorder %s18, 1
      %p35 = por %p33, %p34
      %p36 = scmp.ne.s32.totalorder %s28, %s31
      %p37 = scmp.eq.s32.totalorder %s18, 0
      %p38 = por %p36, %p37
      %p39 = scmp.ne.s32.totalorder %s28, %s31
      %p40 = scmp.eq.s32.totalorder %s23, 1
      %p41 = por %p39, %p40
      %p42 = scmp.ne.s32.totalorder %s31, %s32
      %p43 = scmp.eq.s32.totalorder %s23, 0
      %p44 = por %p42, %p43
      %p45 = scmp.ne.s32.totalorder %s31, %s32
      %p46 = scmp.eq.s32.totalorder %s24, 1
      %p47 = por %p45, %p46
      %p49 = scmp.ne.s32.totalorder %s32, %s48
      %p50 = scmp.eq.s32.totalorder %s24, 0
      %p51 = por %p49, %p50
      %s53 = sadd.s32 %s52, 1
      %p56 = scmp.eq.s32.totalorder %s18, 1
      %p57 = scmp.ne.s32.totalorder %s52, %s54
      %p58 = scmp.eq.s32.totalorder %s18, 0
      %p59 = por %p57, %p58
      %p60 = scmp.ne.s32.totalorder %s52, %s54
      %p61 = scmp.eq.s32.totalorder %s23, 1
      %p62 = por %p60, %p61
      %p63 = scmp.ne.s32.totalorder %s54, %s55
      %p64 = scmp.eq.s32.totalorder %s23, 0
      %p65 = por %p63, %p64
      %p66 = scmp.ne.s32.totalorder %s54, %s55
      %p67 = scmp.eq.s32.totalorder %s24, 1
      %p68 = por %p66, %p67
      %p70 = scmp.ne.s32.totalorder %s55, %s69
      %p71 = scmp.eq.s32.totalorder %s24, 0
      %p72 = por %p70, %p71
      %s74 = sadd.s32 %s73, 1
      %p77 = scmp.eq.s32.totalorder %s18, 1
      %p78 = scmp.ne.s32.totalorder %s73, %s75
      %p79 = scmp.eq.s32.totalorder %s18, 0
      %p80 = por %p78, %p79
      %p81 = scmp.ne.s32.totalorder %s73, %s75
      %p82 = scmp.eq.s32.totalorder %s23, 1
      %p83 = por %p81, %p82
      %p84 = scmp.ne.s32.totalorder %s75, %s76
      %p85 = scmp.eq.s32.totalorder %s23, 0
      %p86 = por %p84, %p85
      %p87 = scmp.ne.s32.totalorder %s75, %s76
      %p88 = scmp.eq.s32.totalorder %s24, 1
      %p89 = por %p87, %p88
      %p91 = scmp.ne.s32.totalorder %s76, %s90
      %p92 = scmp.eq.s32.totalorder %s24, 0
      %p93 = por %p91, %p92
      %s95 = sadd.s32 %s94, 1
      %p98 = scmp.eq.s32.totalorder %s18, 1
      %p99 = scmp.ne.s32.totalorder %s94, %s96
      %p100 = scmp.eq.s32.totalorder %s18, 0
      %p101 = por %p99, %p100
      %p102 = scmp.ne.s32.totalorder %s94, %s96
      %p103 = scmp.eq.s32.totalorder %s23, 1
      %p104 = por %p102, %p103
      %p105 = scmp.ne.s32.totalorder %s96, %s97
      %p106 = scmp.eq.s32.totalorder %s23, 0
      %p107 = por %p105, %p106
      %p108 = scmp.ne.s32.totalorder %s96, %s97
      %p109 = scmp.eq.s32.totalorder %s24, 1
      %p110 = por %p108, %p109
      %p112 = scmp.ne.s32.totalorder %s97, %s111
      %p113 = scmp.eq.s32.totalorder %s24, 0
      %p114 = por %p112, %p113
      %s116 = sadd.s32 %s115, 1
      %p119 = scmp.eq.s32.totalorder %s18, 1
      %p120 = scmp.ne.s32.totalorder %s115, %s117
      %p121 = scmp.eq.s32.totalorder %s18, 0
      %p122 = por %p120, %p121
      %p123 = scmp.ne.s32.totalorder %s115, %s117
      %p124 = scmp.eq.s32.totalorder %s23, 1
      %p125 = por %p123, %p124
      %p126 = scmp.ne.s32.totalorder %s117, %s118
      %p127 = scmp.eq.s32.totalorder %s23, 0
      %p128 = por %p126, %p127
      %p129 = scmp.ne.s32.totalorder %s117, %s118
      %p130 = scmp.eq.s32.totalorder %s24, 1
      %p131 = por %p129, %p130
      %p133 = scmp.ne.s32.totalorder %s118, %s132
      %p134 = scmp.eq.s32.totalorder %s24, 0
      %p135 = por %p133, %p134
      %s137 = sadd.s32 %s136, 1
      %p140 = scmp.eq.s32.totalorder %s18, 1
      %p141 = scmp.ne.s32.totalorder %s136, %s138
      %p142 = scmp.eq.s32.totalorder %s18, 0
      %p143 = por %p141, %p142
      %p144 = scmp.ne.s32.totalorder %s136, %s138
      %p145 = scmp.eq.s32.totalorder %s23, 1
      %p146 = por %p144, %p145
      %p147 = scmp.ne.s32.totalorder %s138, %s139
      %p148 = scmp.eq.s32.totalorder %s23, 0
      %p149 = por %p147, %p148
      %p150 = scmp.ne.s32.totalorder %s138, %s139
      %p151 = scmp.eq.s32.totalorder %s24, 1
      %p152 = por %p150, %p151
      %p154 = scmp.ne.s32.totalorder %s139, %s153
      %p155 = scmp.eq.s32.totalorder %s24, 0
      %p156 = por %p154, %p155
      %s158 = sadd.s32 %s157, 1
      %p161 = scmp.eq.s32.totalorder %s18, 1
      %p162 = scmp.ne.s32.totalorder %s157, %s159
      %p163 = scmp.eq.s32.totalorder %s18, 0
      %p164 = por %p162, %p163
      %p165 = scmp.ne.s32.totalorder %s157, %s159
      %p166 = scmp.eq.s32.totalorder %s23, 1
      %p167 = por %p165, %p166
      %p168 = scmp.ne.s32.totalorder %s159, %s160
      %p169 = scmp.eq.s32.totalorder %s23, 0
      %p170 = por %p168, %p169
      %p171 = scmp.ne.s32.totalorder %s159, %s160
      %p172 = scmp.eq.s32.totalorder %s24, 1
      %p173 = por %p171, %p172
      %p175 = scmp.ne.s32.totalorder %s160, %s174
      %p176 = scmp.eq.s32.totalorder %s24, 0
      %p177 = por %p175, %p176
      %s178 = ssub.s32 %s18, %s25
      %p179 = scmp.eq.s32.totalorder %s178, 0
      %s181 = sadd.s32 %s180, 1
      %s182 = scalar_select %p179, %s180, %s181
      %p185 = pneg %p179
      %p186 = scmp.eq.s32.totalorder %s18, 1
      %p187 = por %p185, %p186
      %p188 = scmp.ne.s32.totalorder %s180, %s183
      %p189 = scmp.eq.s32.totalorder %s18, 0
      %p190 = por %p188, %p189
      %p191 = scmp.ne.s32.totalorder %s180, %s183
      %p192 = scmp.eq.s32.totalorder %s23, 1
      %p193 = por %p191, %p192
      %p194 = scmp.ne.s32.totalorder %s183, %s184
      %p195 = scmp.eq.s32.totalorder %s23, 0
      %p196 = por %p194, %p195
      %p197 = scmp.ne.s32.totalorder %s183, %s184
      %p198 = scmp.eq.s32.totalorder %s24, 1
      %p199 = por %p197, %p198
      %p201 = scmp.ne.s32.totalorder %s184, %s200
      %p202 = scmp.eq.s32.totalorder %s24, 0
      %p203 = por %p201, %p202
      %p204 = scmp.le.s32.totalorder 1, %s18
      %p205 = scmp.lt.s32.totalorder %s18, 3
      %p206 = pnand %p204, %p205
      %p207 = pneg %p206
      // Predicated region
      $region9: #{tpu_custom_call.1} parent=5 // pred_check
        _
      $region10: #{tpu_custom_call.1} parent=5 // pred_check_branch
        %209 = sbr.rel (%p206) target = $region12
      $region11: #{tpu_custom_call.1} parent=5 // pred_region
        %s210 = ssub.s32 %s18, 1
        // Predicated region
        $region13: #{tpu_custom_call.1} parent=11 // pred_check
          %p211 = pneg %p65
        $region14: #{tpu_custom_call.1} parent=11 // pred_check_branch
          %213 = sbr.rel (%p211) target = $region16
        $region15: #{tpu_custom_call.1} parent=11 // pred_region
          _
        $region16: #{tpu_custom_call.1} parent=11 // pred_fallthru
          _
        // Predicated region
        $region17: #{tpu_custom_call.1} parent=11 // pred_check
          %p214 = pneg %p86
        $region18: #{tpu_custom_call.1} parent=11 // pred_check_branch
          %216 = sbr.rel (%p214) target = $region20
        $region19: #{tpu_custom_call.1} parent=11 // pred_region
          _
        $region20: #{tpu_custom_call.1} parent=11 // pred_fallthru
          _
        // Predicated region
        $region21: #{tpu_custom_call.1} parent=11 // pred_check
          %p217 = pneg %p107
        $region22: #{tpu_custom_call.1} parent=11 // pred_check_branch
          %219 = sbr.rel (%p217) target = $region24
        $region23: #{tpu_custom_call.1} parent=11 // pred_region
          _
        $region24: #{tpu_custom_call.1} parent=11 // pred_fallthru
          _
        // Predicated region
        $region25: #{tpu_custom_call.1} parent=11 // pred_check
          %p220 = pneg %p128
        $region26: #{tpu_custom_call.1} parent=11 // pred_check_branch
          %222 = sbr.rel (%p220) target = $region28
        $region27: #{tpu_custom_call.1} parent=11 // pred_region
          %224 = vsyncadd [#allocation4], 0
          %s225 = sshll.u32 %s4, 4
          %s226 = int_to_ptr.hbm [resolvable:$true] %s225
          %s227 = sshll.u32 [#allocation3], 4
          %s228 = int_to_ptr.vmem [resolvable:$true] %s227
          %233 = dma.hbm_to_vmem [thread:$0]  %s226, 256, %s228, [#allocation4], 128, 128, 8
        $region28: #{tpu_custom_call.1} parent=11 // pred_fallthru
          _
        // Predicated region
        $region29: #{tpu_custom_call.1} parent=11 // pred_check
          %p234 = pneg %p149
        $region30: #{tpu_custom_call.1} parent=11 // pred_check_branch
          %236 = sbr.rel (%p234) target = $region32
        $region31: #{tpu_custom_call.1} parent=11 // pred_region
          _
        $region32: #{tpu_custom_call.1} parent=11 // pred_fallthru
          _
        // Predicated region
        $region33: #{tpu_custom_call.1} parent=11 // pred_check
          %p237 = pneg %p170
        $region34: #{tpu_custom_call.1} parent=11 // pred_check_branch
          %239 = sbr.rel (%p237) target = $region36
        $region35: #{tpu_custom_call.1} parent=11 // pred_region
          %241 = vsyncadd [#allocation7], 0
          %s242 = sshll.u32 %s6, 4
          %s243 = int_to_ptr.hbm [resolvable:$true] %s242
          %s244 = sshll.u32 [#allocation6], 4
          %s245 = int_to_ptr.vmem [resolvable:$true] %s244
          %250 = dma.hbm_to_vmem [thread:$0]  %s243, 1024, %s245, [#allocation7], 128, 128, 8
        $region36: #{tpu_custom_call.1} parent=11 // pred_fallthru
          _
      $region12: #{tpu_custom_call.1} parent=5 // pred_fallthru
        _
      %p251 = scmp.lt.s32.totalorder %s18, 2
      // Predicated region
      $region37: #{tpu_custom_call.1} parent=5 // pred_check
        %p252 = pneg %p251
      $region38: #{tpu_custom_call.1} parent=5 // pred_check_branch
        %254 = sbr.rel (%p252) target = $region40
      $region39: #{tpu_custom_call.1} parent=5 // pred_region
        // Predicated region
        $region41: #{tpu_custom_call.1} parent=39 // pred_check
          %p255 = pneg %p38
        $region42: #{tpu_custom_call.1} parent=39 // pred_check_branch
          %257 = sbr.rel (%p255) target = $region44
        $region43: #{tpu_custom_call.1} parent=39 // pred_region
          %p258 = scmp.lt.s32.totalorder %s18, 1
          %s259 = scalar_select %p258, %s18, 1
          %s260 = smul.addr %s259, 2
          %s261 = smul.addr %s260, 8
          %s262 = scalar_lea.vmem %s0, %s261
        $region44: #{tpu_custom_call.1} parent=39 // pred_fallthru
          _
      $region40: #{tpu_custom_call.1} parent=5 // pred_fallthru
        _
      %p263 = scmp.le.s32.totalorder 1, %s18
      %p264 = scmp.lt.s32.totalorder %s18, 3
      %p265 = pnand %p263, %p264
      %p266 = pneg %p265
      // Predicated region
      $region45: #{tpu_custom_call.1} parent=5 // pred_check
        _
      $region46: #{tpu_custom_call.1} parent=5 // pred_check_branch
        %268 = sbr.rel (%p265) target = $region48
      $region47: #{tpu_custom_call.1} parent=5 // pred_region
        %s269 = ssub.s32 %s18, 1
        // Predicated region
        $region49: #{tpu_custom_call.1} parent=47 // pred_check
          %p270 = pneg %p128
        $region50: #{tpu_custom_call.1} parent=47 // pred_check_branch
          %272 = sbr.rel (%p270) target = $region52
        $region51: #{tpu_custom_call.1} parent=47 // pred_region
          %274 = dma.done [#allocation4], 256
        $region52: #{tpu_custom_call.1} parent=47 // pred_fallthru
          _
        // Predicated region
        $region53: #{tpu_custom_call.1} parent=47 // pred_check
          %p275 = pneg %p170
        $region54: #{tpu_custom_call.1} parent=47 // pred_check_branch
          %277 = sbr.rel (%p275) target = $region56
        $region55: #{tpu_custom_call.1} parent=47 // pred_region
          %279 = dma.done [#allocation7], 1024
        $region56: #{tpu_custom_call.1} parent=47 // pred_fallthru
          _
        %p280 = scmp.lt.s32.totalorder %s23, 1
        %s281 = scalar_select %p280, %s23, 1
        %s282 = smul.addr %s281, 2
        %s283 = smul.addr %s282, 8
        %s284 = scalar_lea.vmem %s0, %s283
        %p285 = pneg %p44
        %p286 = pneg %p41
        %p287 = pneg %p65
        %p288 = pneg %p62
        %p289 = pneg %p86
        %p290 = pneg %p83
        %p291 = pneg %p107
        %p292 = pneg %p104
        %p293 = pneg %p128
        %p294 = pneg %p125
        %p295 = pneg %p149
        %p296 = pneg %p146
        %p297 = pneg %p170
        %p298 = pneg %p167
        %p299 = pneg %p196
        %p300 = pneg %p193
        %s301 = sand.u32 %s183, 1
        %s302 = scalar_lea.sflag [#allocation5], %s301
        %s303 = sand.u32 %s183, 1
        %s304 = smul.addr %s303, 16
        %s305 = scalar_lea.vmem [#allocation8], %s304
        %p306 = scmp.lt.s32.totalorder %s23, 1
        %s307 = scalar_select %p306, %s23, 1
        %s308 = smul.addr %s307, 2
        %s309 = smul.addr %s308, 8
        %s310 = scalar_lea.vmem %s0, %s309
        %v312 = vld [vmem:[%s310] sm:$0xff]
        %v313 = vld [vmem:[%s310 + $0x8] sm:$0xff]
        %v314 = vpack.c.bf16 %v313, %v312
        %v315 = vld [vmem:[%s1] sm:$0xf]
        %v316 = vld [vmem:[%s1 + $0x4] sm:$0xf]
        %v317 = vld [vmem:[%s1 + $0x8] sm:$0xf]
        %v318 = vld [vmem:[%s1 + $0xc] sm:$0xf]
        %v323 = vunpack.c.l.b16 %v315
        %v324 = vunpack.c.l.b16 %v316
        %v325 = vunpack.c.l.b16 %v317
        %v326 = vunpack.c.l.b16 %v318
        %v327 = vpack.c.b16 %v324, %v323
        %v328 = vpack.c.b16 %v326, %v325
        %vm331 = vcmask 261120
        %v333 = vsel %vm331, %v314, 0
        %335 = vmatpush.bf16.msra.mxu0 0
        %336 = vmatpush.bf16.msra.mxu0 0
        %337 = vmatpush.bf16.msra.mxu0 0
        %338 = vmatpush.bf16.msra.mxu0 0
        %339 = vmatpush.bf16.msra.mxu0 0
        %340 = vmatpush.bf16.msra.mxu0 0
        %341 = vmatpush.bf16.msra.mxu0 %v328
        %342 = vmatpush.bf16.msra.mxu0 %v327
        %343 = vmatmul.bf16.gmra.mxu0 %v333
        %v344 = vpop.f32.mrf.mxu0
        %v345 = vadd.f32 0.0, %v344
        %v346 = vpop.f32.mrf.mxu0
        %v347 = vadd.f32 0.0, %v346
        %348 = vdwg.mxu0
        %vm349 = vcmask 294144
        %v350 = vsel %vm349, %v345, -inf
        %351 = vmax.xlane.f32.xlu0 %v350
        %v352 = vpop.xlane.xlu0 %351
        %v353 = vsel %vm349, %v347, -inf
        %354 = vmax.xlane.f32.xlu0 %v353
        %v355 = vpop.xlane.xlu0 %354
        %v356 = vsub.f32 %v345, %v352
        %v357 = vsub.f32 %v347, %v355
        %v358 = vmul.f32 %v356, 1.442695
        %v359 = vpow.pop %v358
        %v360 = vmul.f32 %v357, 1.442695
        %v361 = vpow.pop %v360
        %364 = vrot.lane.b32.xlu0 %v359, 96
        %v365 = vpop.permute.xlu0 %364
        %366 = vrot.lane.b32.xlu0 %v361, 96
        %v367 = vpop.permute.xlu0 %366
        %vm370 = vcmask 31744
        %v371 = vsel %vm370, %v365, 0.0
        %372 = vadd.xlane.f32.xlu0 %v371
        %v373 = vpop.xlane.xlu0 %372
        %v374 = vsel %vm370, %v367, 0.0
        %375 = vadd.xlane.f32.xlu0 %v374
        %v376 = vpop.xlane.xlu0 %375
        %v377 = vrcp.pop %v373
        %v378 = vrcp.pop %v376
        %v379 = vmul.f32 %v359, %v377
        %v380 = vmul.f32 %v361, %v378
        %vm381 = vcmask 326944
        %v382 = vsel %vm381, %v345, -inf
        %383 = vmax.xlane.f32.xlu0 %v382
        %v384 = vpop.xlane.xlu0 %383
        %v385 = vsel %vm381, %v347, -inf
        %386 = vmax.xlane.f32.xlu0 %v385
        %v387 = vpop.xlane.xlu0 %386
        %v388 = vsub.f32 %v345, %v384
        %v389 = vsub.f32 %v347, %v387
        %v390 = vmul.f32 %v388, 1.442695
        %v391 = vpow.pop %v390
        %v392 = vmul.f32 %v389, 1.442695
        %v393 = vpow.pop %v392
        %396 = vrot.lane.b32.xlu0 %v391, 92
        %v397 = vpop.permute.xlu0 %396
        %398 = vrot.lane.b32.xlu0 %v393, 92
        %v399 = vpop.permute.xlu0 %398
        %v402 = vsel %vm370, %v397, 0.0
        %403 = vadd.xlane.f32.xlu0 %v402
        %v404 = vpop.xlane.xlu0 %403
        %v405 = vsel %vm370, %v399, 0.0
        %406 = vadd.xlane.f32.xlu0 %v405
        %v407 = vpop.xlane.xlu0 %406
        %v408 = vrcp.pop %v404
        %v409 = vrcp.pop %v407
        %v410 = vmul.f32 %v391, %v408
        %v411 = vmul.f32 %v393, %v409
        %vm412 = vcmask 359744
        %v413 = vsel %vm412, %v345, -inf
        %414 = vmax.xlane.f32.xlu0 %v413
        %v415 = vpop.xlane.xlu0 %414
        %v416 = vsel %vm412, %v347, -inf
        %417 = vmax.xlane.f32.xlu0 %v416
        %v418 = vpop.xlane.xlu0 %417
        %v419 = vsub.f32 %v345, %v415
        %v420 = vsub.f32 %v347, %v418
        %v421 = vmul.f32 %v419, 1.442695
        %v422 = vpow.pop %v421
        %v423 = vmul.f32 %v420, 1.442695
        %v424 = vpow.pop %v423
        %427 = vrot.lane.b32.xlu0 %v422, 88
        %v428 = vpop.permute.xlu0 %427
        %429 = vrot.lane.b32.xlu0 %v424, 88
        %v430 = vpop.permute.xlu0 %429
        %v433 = vsel %vm370, %v428, 0.0
        %434 = vadd.xlane.f32.xlu0 %v433
        %v435 = vpop.xlane.xlu0 %434
        %v436 = vsel %vm370, %v430, 0.0
        %437 = vadd.xlane.f32.xlu0 %v436
        %v438 = vpop.xlane.xlu0 %437
        %v439 = vrcp.pop %v435
        %v440 = vrcp.pop %v438
        %v441 = vmul.f32 %v422, %v439
        %v442 = vmul.f32 %v424, %v440
        %vm443 = vcmask 392544
        %v444 = vsel %vm443, %v345, -inf
        %445 = vmax.xlane.f32.xlu0 %v444
        %v446 = vpop.xlane.xlu0 %445
        %v447 = vsel %vm443, %v347, -inf
        %448 = vmax.xlane.f32.xlu0 %v447
        %v449 = vpop.xlane.xlu0 %448
        %v450 = vsub.f32 %v345, %v446
        %v451 = vsub.f32 %v347, %v449
        %v452 = vmul.f32 %v450, 1.442695
        %v453 = vpow.pop %v452
        %v454 = vmul.f32 %v451, 1.442695
        %v455 = vpow.pop %v454
        %458 = vrot.lane.b32.xlu0 %v453, 84
        %v459 = vpop.permute.xlu0 %458
        %460 = vrot.lane.b32.xlu0 %v455, 84
        %v461 = vpop.permute.xlu0 %460
        %v464 = vsel %vm370, %v459, 0.0
        %465 = vadd.xlane.f32.xlu0 %v464
        %v466 = vpop.xlane.xlu0 %465
        %v467 = vsel %vm370, %v461, 0.0
        %468 = vadd.xlane.f32.xlu0 %v467
        %v469 = vpop.xlane.xlu0 %468
        %v470 = vrcp.pop %v466
        %v471 = vrcp.pop %v469
        %v472 = vmul.f32 %v453, %v470
        %v473 = vmul.f32 %v455, %v471
        %vm474 = vcmask 425344
        %v475 = vsel %vm474, %v345, -inf
        %476 = vmax.xlane.f32.xlu0 %v475
        %v477 = vpop.xlane.xlu0 %476
        %v478 = vsel %vm474, %v347, -inf
        %479 = vmax.xlane.f32.xlu0 %v478
        %v480 = vpop.xlane.xlu0 %479
        %v481 = vsub.f32 %v345, %v477
        %v482 = vsub.f32 %v347, %v480
        %v483 = vmul.f32 %v481, 1.442695
        %v484 = vpow.pop %v483
        %v485 = vmul.f32 %v482, 1.442695
        %v486 = vpow.pop %v485
        %489 = vrot.lane.b32.xlu0 %v484, 80
        %v490 = vpop.permute.xlu0 %489
        %491 = vrot.lane.b32.xlu0 %v486, 80
        %v492 = vpop.permute.xlu0 %491
        %v495 = vsel %vm370, %v490, 0.0
        %496 = vadd.xlane.f32.xlu0 %v495
        %v497 = vpop.xlane.xlu0 %496
        %v498 = vsel %vm370, %v492, 0.0
        %499 = vadd.xlane.f32.xlu0 %v498
        %v500 = vpop.xlane.xlu0 %499
        %v501 = vrcp.pop %v497
        %v502 = vrcp.pop %v500
        %v503 = vmul.f32 %v484, %v501
        %v504 = vmul.f32 %v486, %v502
        %vm505 = vcmask 458144
        %v506 = vsel %vm505, %v345, -inf
        %507 = vmax.xlane.f32.xlu0 %v506
        %v508 = vpop.xlane.xlu0 %507
        %v509 = vsel %vm505, %v347, -inf
        %510 = vmax.xlane.f32.xlu0 %v509
        %v511 = vpop.xlane.xlu0 %510
        %v512 = vsub.f32 %v345, %v508
        %v513 = vsub.f32 %v347, %v511
        %v514 = vmul.f32 %v512, 1.442695
        %v515 = vpow.pop %v514
        %v516 = vmul.f32 %v513, 1.442695
        %v517 = vpow.pop %v516
        %520 = vrot.lane.b32.xlu0 %v515, 76
        %v521 = vpop.permute.xlu0 %520
        %522 = vrot.lane.b32.xlu0 %v517, 76
        %v523 = vpop.permute.xlu0 %522
        %v526 = vsel %vm370, %v521, 0.0
        %527 = vadd.xlane.f32.xlu0 %v526
        %v528 = vpop.xlane.xlu0 %527
        %v529 = vsel %vm370, %v523, 0.0
        %530 = vadd.xlane.f32.xlu0 %v529
        %v531 = vpop.xlane.xlu0 %530
        %v532 = vrcp.pop %v528
        %v533 = vrcp.pop %v531
        %v534 = vmul.f32 %v515, %v532
        %v535 = vmul.f32 %v517, %v533
        %vm536 = vcmask 490944
        %v537 = vsel %vm536, %v345, -inf
        %538 = vmax.xlane.f32.xlu0 %v537
        %v539 = vpop.xlane.xlu0 %538
        %v540 = vsel %vm536, %v347, -inf
        %541 = vmax.xlane.f32.xlu0 %v540
        %v542 = vpop.xlane.xlu0 %541
        %v543 = vsub.f32 %v345, %v539
        %v544 = vsub.f32 %v347, %v542
        %v545 = vmul.f32 %v543, 1.442695
        %v546 = vpow.pop %v545
        %v547 = vmul.f32 %v544, 1.442695
        %v548 = vpow.pop %v547
        %551 = vrot.lane.b32.xlu0 %v546, 72
        %v552 = vpop.permute.xlu0 %551
        %553 = vrot.lane.b32.xlu0 %v548, 72
        %v554 = vpop.permute.xlu0 %553
        %v557 = vsel %vm370, %v552, 0.0
        %558 = vadd.xlane.f32.xlu0 %v557
        %v559 = vpop.xlane.xlu0 %558
        %v560 = vsel %vm370, %v554, 0.0
        %561 = vadd.xlane.f32.xlu0 %v560
        %v562 = vpop.xlane.xlu0 %561
        %v563 = vrcp.pop %v559
        %v564 = vrcp.pop %v562
        %v565 = vmul.f32 %v546, %v563
        %v566 = vmul.f32 %v548, %v564
        %vm567 = vcmask 523744
        %v568 = vsel %vm567, %v345, -inf
        %569 = vmax.xlane.f32.xlu0 %v568
        %v570 = vpop.xlane.xlu0 %569
        %v571 = vsel %vm567, %v347, -inf
        %572 = vmax.xlane.f32.xlu0 %v571
        %v573 = vpop.xlane.xlu0 %572
        %v574 = vsub.f32 %v345, %v570
        %v575 = vsub.f32 %v347, %v573
        %v576 = vmul.f32 %v574, 1.442695
        %v577 = vpow.pop %v576
        %v578 = vmul.f32 %v575, 1.442695
        %v579 = vpow.pop %v578
        %582 = vrot.lane.b32.xlu0 %v577, 68
        %v583 = vpop.permute.xlu0 %582
        %584 = vrot.lane.b32.xlu0 %v579, 68
        %v585 = vpop.permute.xlu0 %584
        %v588 = vsel %vm370, %v583, 0.0
        %589 = vadd.xlane.f32.xlu0 %v588
        %v590 = vpop.xlane.xlu0 %589
        %v591 = vsel %vm370, %v585, 0.0
        %592 = vadd.xlane.f32.xlu0 %v591
        %v593 = vpop.xlane.xlu0 %592
        %v594 = vrcp.pop %v590
        %v595 = vrcp.pop %v593
        %v596 = vmul.f32 %v577, %v594
        %v597 = vmul.f32 %v579, %v595
        %600 = vrot.lane.b32.xlu0 %v379, 96
        %v601 = vpop.permute.xlu0 %600
        %602 = vrot.lane.b32.xlu0 %v380, 96
        %v603 = vpop.permute.xlu0 %602
        %608 = vrot.lane.b32.xlu0 %v410, 96
        %v609 = vpop.permute.xlu0 %608
        %610 = vrot.lane.b32.xlu0 %v411, 96
        %v611 = vpop.permute.xlu0 %610
        %616 = vrot.lane.b32.xlu0 %v441, 96
        %v617 = vpop.permute.xlu0 %616
        %618 = vrot.lane.b32.xlu0 %v442, 96
        %v619 = vpop.permute.xlu0 %618
        %624 = vrot.lane.b32.xlu0 %v472, 96
        %v625 = vpop.permute.xlu0 %624
        %626 = vrot.lane.b32.xlu0 %v473, 96
        %v627 = vpop.permute.xlu0 %626
        %632 = vrot.lane.b32.xlu0 %v503, 96
        %v633 = vpop.permute.xlu0 %632
        %634 = vrot.lane.b32.xlu0 %v504, 96
        %v635 = vpop.permute.xlu0 %634
        %640 = vrot.lane.b32.xlu0 %v534, 96
        %v641 = vpop.permute.xlu0 %640
        %642 = vrot.lane.b32.xlu0 %v535, 96
        %v643 = vpop.permute.xlu0 %642
        %648 = vrot.lane.b32.xlu0 %v565, 96
        %v649 = vpop.permute.xlu0 %648
        %650 = vrot.lane.b32.xlu0 %v566, 96
        %v651 = vpop.permute.xlu0 %650
        %656 = vrot.lane.b32.xlu0 %v596, 96
        %v657 = vpop.permute.xlu0 %656
        %658 = vrot.lane.b32.xlu0 %v597, 96
        %v659 = vpop.permute.xlu0 %658
        %v662 = vsel %vm370, %v601, %v609
        %v663 = vsel %vm370, %v603, %v611
        %vm664 = vcmask 64512
        %v665 = vsel %vm664, %v662, %v617
        %v666 = vsel %vm664, %v663, %v619
        %vm667 = vcmask 97280
        %v668 = vsel %vm667, %v665, %v625
        %v669 = vsel %vm667, %v666, %v627
        %vm670 = vcmask 130048
        %v671 = vsel %vm670, %v668, %v633
        %v672 = vsel %vm670, %v669, %v635
        %vm673 = vcmask 162816
        %v674 = vsel %vm673, %v671, %v641
        %v675 = vsel %vm673, %v672, %v643
        %vm676 = vcmask 195584
        %v677 = vsel %vm676, %v674, %v649
        %v678 = vsel %vm676, %v675, %v651
        %vm679 = vcmask 228352
        %v680 = vsel %vm679, %v677, %v657
        %v681 = vsel %vm679, %v678, %v659
        %v682 = vpack.c.bf16 %v681, %v680
        %v683 = vpack.c.bf16 %v347, %v345
        %684 = vxpose.xlu0.c.b16.start [1/8] %v682, 128
        %685 = vxpose.xlu0.c.b16.cont [2/8] 0, 128
        %686 = vxpose.xlu0.c.b16.cont [3/8] 0, 128
        %687 = vxpose.xlu0.c.b16.cont [4/8] 0, 128
        %688 = vxpose.xlu0.c.b16.cont [5/8] 0, 128
        %689 = vxpose.xlu0.c.b16.cont [6/8] 0, 128
        %690 = vxpose.xlu0.c.b16.cont [7/8] 0, 128
        %691 = vxpose.xlu0.c.b16.end [8/8] 0, 128
        %v692 = vpop.trf.xlu0
        %v693 = vpop.trf.xlu0
        %v694 = vpop.trf.xlu0
        %v695 = vpop.trf.xlu0
        %v696 = vpop.trf.xlu0
        %v697 = vpop.trf.xlu0
        %v698 = vpop.trf.xlu0
        %v699 = vpop.trf.xlu0
        %701 = vrot.lane.b32.xlu0 %v683, 64
        %v702 = vpop.permute.xlu0 %701
        %v705 = vsel %vm670, %v692, 0
        %v708 = vsel %vm670, %v693, 0
        %710 = vmatpush.bf16.msra.mxu0 0
        %711 = vmatpush.bf16.msra.mxu0 0
        %712 = vmatpush.bf16.msra.mxu0 0
        %713 = vmatpush.bf16.msra.mxu0 0
        %714 = vmatpush.bf16.msra.mxu0 0
        %715 = vmatpush.bf16.msra.mxu0 0
        %716 = vmatpush.bf16.msra.mxu0 0
        %717 = vmatpush.bf16.msra.mxu0 %v702
        %718 = vmatmul.bf16.gmra.mxu0 %v705
        %v719 = vpop.f32.mrf.mxu0
        %v720 = vadd.f32 0.0, %v719
        %v721 = vpop.f32.mrf.mxu0
        %v722 = vadd.f32 0.0, %v721
        %723 = vmatmul.bf16.gmra.mxu0 %v708
        %v724 = vpop.f32.mrf.mxu0
        %v725 = vadd.f32 0.0, %v724
        %v726 = vpop.f32.mrf.mxu0
        %v727 = vadd.f32 0.0, %v726
        %728 = vdwg.mxu0
        %v730 = vrot.slane %v720, 4
        %v733 = vrot.slane %v722, 4
        %v736 = vrot.slane %v725, 4
        %v739 = vrot.slane %v727, 4
        %v741 = vsel %vm370, %v720, %v730
        %v742 = vsel %vm664, %v741, %v722
        %v743 = vsel %vm667, %v742, %v733
        %v744 = vsel %vm670, %v743, %v725
        %v745 = vsel %vm673, %v744, %v736
        %v746 = vsel %vm676, %v745, %v727
        %v747 = vsel %vm679, %v746, %v739
        %750 = vrot.lane.b32.xlu0 %v345, 126
        %v751 = vpop.permute.xlu0 %750
        %752 = vrot.lane.b32.xlu0 %v347, 126
        %v753 = vpop.permute.xlu0 %752
        %756 = vrot.lane.b32.xlu0 %v345, 30
        %v757 = vpop.permute.xlu0 %756
        %758 = vrot.lane.b32.xlu0 %v347, 30
        %v759 = vpop.permute.xlu0 %758
        %vm762 = vcmask 244736
        %v763 = vsel %vm762, %v751, %v757
        %v764 = vsel %vm762, %v753, %v759
        %767 = vrot.lane.b32.xlu0 %v763, 32
        %v768 = vpop.permute.xlu0 %767
        %769 = vrot.lane.b32.xlu0 %v764, 32
        %v770 = vpop.permute.xlu0 %769
        %v773 = vsel %vm331, %v345, %v768
        %v774 = vsel %vm331, %v347, %v770
        %776 = vrot.lane.b32.xlu0 %v747, 126
        %v777 = vpop.permute.xlu0 %776
        %779 = vrot.lane.b32.xlu0 %v747, 30
        %v780 = vpop.permute.xlu0 %779
        %v782 = vsel %vm762, %v777, %v780
        %784 = vrot.lane.b32.xlu0 %v782, 32
        %v785 = vpop.permute.xlu0 %784
        %v787 = vsel %vm331, %v747, %v785
        %v788 = vmul.f32 %v787, 0.5
        %v790 = vrot.slane %v788, 4
        %vm792 = vcmask 1043456
        %v793 = vsel %vm792, %v788, %v790
        %v794 = vld [vmem:[#allocation6] sm:$0xff]
        %v795 = vld [vmem:[#allocation6 + $0x8] sm:$0xff]
        %v796 = vld [vmem:[#allocation6 + $0x10] sm:$0xff]
        %v797 = vld [vmem:[#allocation6 + $0x18] sm:$0xff]
        %v798 = vld [vmem:[#allocation6 + $0x20] sm:$0xff]
        %v799 = vld [vmem:[#allocation6 + $0x28] sm:$0xff]
        %v800 = vld [vmem:[#allocation6 + $0x30] sm:$0xff]
        %v801 = vld [vmem:[#allocation6 + $0x38] sm:$0xff]
        %v802 = vmul.f32 %v793, %v794
        %v803 = vmul.f32 %v793, %v795
        %v804 = vmul.f32 %v793, %v796
        %v805 = vmul.f32 %v793, %v797
        %v806 = vmul.f32 %v793, %v798
        %v807 = vmul.f32 %v793, %v799
        %v808 = vmul.f32 %v793, %v800
        %v809 = vmul.f32 %v793, %v801
        %v810 = vpack.c.bf16 %v803, %v802
        %v811 = vpack.c.bf16 %v805, %v804
        %v812 = vpack.c.bf16 %v807, %v806
        %v813 = vpack.c.bf16 %v809, %v808
        %v814 = vpack.c.bf16 %v774, %v773
        %vm815 = vcmask 521216
        %816 = vst.msk [vmem:[#allocation2] sm:$0x3f] %vm815, 0.0
        %s817 = scalar_lea.vmem [#allocation2], 40
        %818 = vst.msk [vmem:[%s817] sm:$0x3f] %vm815, 0.0
        %s819 = scalar_lea.vmem [#allocation2], 8
        %vm820 = vcmask 516096
        %821 = vst.msk [vmem:[%s819] sm:$0x1] %vm820, 0.0
        %822 = vst.msk [vmem:[%s819 + $0x8] sm:$0x1] %vm820, 0.0
        %823 = vst.msk [vmem:[%s819 + $0x10] sm:$0x1] %vm820, 0.0
        %824 = vst.msk [vmem:[%s819 + $0x18] sm:$0x1] %vm820, 0.0
        %825 = vst.msk [vmem:[%s819 + $0x5] sm:$0x1] %vm820, 0.0
        %826 = vst.msk [vmem:[%s819 + $0xd] sm:$0x1] %vm820, 0.0
        %827 = vst.msk [vmem:[%s819 + $0x15] sm:$0x1] %vm820, 0.0
        %828 = vst.msk [vmem:[%s819 + $0x1d] sm:$0x1] %vm820, 0.0
        %v831 = vrot.slane %v773, 4
        %v832 = vrot.slane %v774, 4
        %vm835 = vcmask 519168
        %836 = vst.msk [vmem:[%s819 + $0x1] sm:$0xf] %vm835, %v773
        %837 = vst.msk [vmem:[%s819 + $0x9] sm:$0xf] %vm835, %v831
        %838 = vst.msk [vmem:[%s819 + $0x11] sm:$0xf] %vm835, %v774
        %839 = vst.msk [vmem:[%s819 + $0x19] sm:$0xf] %vm835, %v832
        %v840 = vld [vmem:[%s5] sm:$0x1]
        %v842 = vperm.slane %v840, 0
        %v844 = vld [vmem:[#allocation3] sm:$0x1]
        %v845 = vld [vmem:[#allocation2] sm:$0xf]
        %v846 = vld [vmem:[#allocation2 + $0x8] sm:$0xf]
        %v847 = vld [vmem:[#allocation2 + $0x10] sm:$0xf]
        %v848 = vld [vmem:[#allocation2 + $0x18] sm:$0xf]
        %v849 = vperm.slane %v844, 0
        %v850 = vmul.f32 %v845, %v849
        %v851 = vmul.f32 %v846, %v849
        %v852 = vmul.f32 %v847, %v849
        %v853 = vmul.f32 %v848, %v849
        %v854 = vadd.f32 %v842, %v850
        %v855 = vadd.f32 %v842, %v851
        %v856 = vadd.f32 %v842, %v852
        %v857 = vadd.f32 %v842, %v853
        %v858 = vld [vmem:[#allocation3 + $0x1] sm:$0x1]
        %v859 = vld [vmem:[#allocation2 + $0x1] sm:$0xf]
        %v860 = vld [vmem:[#allocation2 + $0x9] sm:$0xf]
        %v861 = vld [vmem:[#allocation2 + $0x11] sm:$0xf]
        %v862 = vld [vmem:[#allocation2 + $0x19] sm:$0xf]
        %v863 = vperm.slane %v858, 0
        %v864 = vmul.f32 %v859, %v863
        %v865 = vmul.f32 %v860, %v863
        %v866 = vmul.f32 %v861, %v863
        %v867 = vmul.f32 %v862, %v863
        %v868 = vadd.f32 %v854, %v864
        %v869 = vadd.f32 %v855, %v865
        %v870 = vadd.f32 %v856, %v866
        %v871 = vadd.f32 %v857, %v867
        %v872 = vld [vmem:[#allocation3 + $0x2] sm:$0x1]
        %v873 = vld [vmem:[#allocation2 + $0x2] sm:$0xf]
        %v874 = vld [vmem:[#allocation2 + $0xa] sm:$0xf]
        %v875 = vld [vmem:[#allocation2 + $0x12] sm:$0xf]
        %v876 = vld [vmem:[#allocation2 + $0x1a] sm:$0xf]
        %v877 = vperm.slane %v872, 0
        %v878 = vmul.f32 %v873, %v877
        %v879 = vmul.f32 %v874, %v877
        %v880 = vmul.f32 %v875, %v877
        %v881 = vmul.f32 %v876, %v877
        %v882 = vadd.f32 %v868, %v878
        %v883 = vadd.f32 %v869, %v879
        %v884 = vadd.f32 %v870, %v880
        %v885 = vadd.f32 %v871, %v881
        %v886 = vld [vmem:[#allocation3 + $0x3] sm:$0x1]
        %v887 = vld [vmem:[%s819] sm:$0xf]
        %v888 = vld [vmem:[%s819 + $0x8] sm:$0xf]
        %v889 = vld [vmem:[%s819 + $0x10] sm:$0xf]
        %v890 = vld [vmem:[%s819 + $0x18] sm:$0xf]
        %v891 = vperm.slane %v886, 0
        %v892 = vmul.f32 %v887, %v891
        %v893 = vmul.f32 %v888, %v891
        %v894 = vmul.f32 %v889, %v891
        %v895 = vmul.f32 %v890, %v891
        %v896 = vadd.f32 %v882, %v892
        %v897 = vadd.f32 %v883, %v893
        %v898 = vadd.f32 %v884, %v894
        %v899 = vadd.f32 %v885, %v895
        %v900 = vld [vmem:[#allocation3 + $0x4] sm:$0x1]
        %v901 = vld [vmem:[%s819 + $0x1] sm:$0xf]
        %v902 = vld [vmem:[%s819 + $0x9] sm:$0xf]
        %v903 = vld [vmem:[%s819 + $0x11] sm:$0xf]
        %v904 = vld [vmem:[%s819 + $0x19] sm:$0xf]
        %v905 = vperm.slane %v900, 0
        %v906 = vmul.f32 %v901, %v905
        %v907 = vmul.f32 %v902, %v905
        %v908 = vmul.f32 %v903, %v905
        %v909 = vmul.f32 %v904, %v905
        %v910 = vadd.f32 %v896, %v906
        %v911 = vadd.f32 %v897, %v907
        %v912 = vadd.f32 %v898, %v908
        %v913 = vadd.f32 %v899, %v909
        %v914 = vld [vmem:[#allocation3 + $0x5] sm:$0x1]
        %v915 = vld [vmem:[%s819 + $0x2] sm:$0xf]
        %v916 = vld [vmem:[%s819 + $0xa] sm:$0xf]
        %v917 = vld [vmem:[%s819 + $0x12] sm:$0xf]
        %v918 = vld [vmem:[%s819 + $0x1a] sm:$0xf]
        %v919 = vperm.slane %v914, 0
        %v920 = vmul.f32 %v915, %v919
        %v921 = vmul.f32 %v916, %v919
        %v922 = vmul.f32 %v917, %v919
        %v923 = vmul.f32 %v918, %v919
        %v924 = vadd.f32 %v910, %v920
        %v925 = vadd.f32 %v911, %v921
        %v926 = vadd.f32 %v912, %v922
        %v927 = vadd.f32 %v913, %v923
        %v928 = vld [vmem:[#allocation3 + $0x6] sm:$0x1]
        %s929 = scalar_lea.vmem [#allocation2], 16
        %v930 = vld [vmem:[%s929] sm:$0xf]
        %v931 = vld [vmem:[%s929 + $0x8] sm:$0xf]
        %v932 = vld [vmem:[%s929 + $0x10] sm:$0xf]
        %v933 = vld [vmem:[%s929 + $0x18] sm:$0xf]
        %v934 = vperm.slane %v928, 0
        %v935 = vmul.f32 %v930, %v934
        %v936 = vmul.f32 %v931, %v934
        %v937 = vmul.f32 %v932, %v934
        %v938 = vmul.f32 %v933, %v934
        %v939 = vadd.f32 %v924, %v935
        %v940 = vadd.f32 %v925, %v936
        %v941 = vadd.f32 %v926, %v937
        %v942 = vadd.f32 %v927, %v938
        %v943 = vld [vmem:[#allocation3 + $0x7] sm:$0x1]
        %v944 = vld [vmem:[%s929 + $0x1] sm:$0xf]
        %v945 = vld [vmem:[%s929 + $0x9] sm:$0xf]
        %v946 = vld [vmem:[%s929 + $0x11] sm:$0xf]
        %v947 = vld [vmem:[%s929 + $0x19] sm:$0xf]
        %v948 = vperm.slane %v943, 0
        %v949 = vmul.f32 %v944, %v948
        %v950 = vmul.f32 %v945, %v948
        %v951 = vmul.f32 %v946, %v948
        %v952 = vmul.f32 %v947, %v948
        %v953 = vadd.f32 %v939, %v949
        %v954 = vadd.f32 %v940, %v950
        %v955 = vadd.f32 %v941, %v951
        %v956 = vadd.f32 %v942, %v952
        %v957 = vld [vmem:[#allocation3 + $0x8] sm:$0x1]
        %v958 = vld [vmem:[%s929 + $0x2] sm:$0xf]
        %v959 = vld [vmem:[%s929 + $0xa] sm:$0xf]
        %v960 = vld [vmem:[%s929 + $0x12] sm:$0xf]
        %v961 = vld [vmem:[%s929 + $0x1a] sm:$0xf]
        %v962 = vperm.slane %v957, 0
        %v963 = vmul.f32 %v958, %v962
        %v964 = vmul.f32 %v959, %v962
        %v965 = vmul.f32 %v960, %v962
        %v966 = vmul.f32 %v961, %v962
        %v967 = vadd.f32 %v953, %v963
        %v968 = vadd.f32 %v954, %v964
        %v969 = vadd.f32 %v955, %v965
        %v970 = vadd.f32 %v956, %v966
        %975 = vst [vmem:[#allocation1] ss:$2 sm:$0xff] %v967
        %s976 = scalar_lea.vmem [#allocation1], 1
        %977 = vst [vmem:[%s976] ss:$2 sm:$0xff] %v968
        %s978 = scalar_lea.vmem [#allocation1], 16
        %979 = vst [vmem:[%s978] ss:$2 sm:$0xff] %v969
        %s980 = scalar_lea.vmem [#allocation1], 17
        %981 = vst [vmem:[%s980] ss:$2 sm:$0xff] %v970
        %v982 = vld.sshfl [vmem:[#allocation1] sm:$0xff pattern:$0x75316420]
        %v983 = vld.sshfl [vmem:[#allocation1 + $0x10] sm:$0xff pattern:$0x75316420]
        %vm986 = vcmask 523264
        %v988 = vsel %vm986, %v814, 0
        %990 = vmatpush.bf16.msra.mxu0 0
        %991 = vmatpush.bf16.msra.mxu0 0
        %992 = vmatpush.bf16.msra.mxu0 0
        %993 = vmatpush.bf16.msra.mxu0 0
        %994 = vmatpush.bf16.msra.mxu0 %v813
        %995 = vmatpush.bf16.msra.mxu0 %v812
        %996 = vmatpush.bf16.msra.mxu0 %v811
        %997 = vmatpush.bf16.msra.mxu0 %v810
        %998 = vmatmul.bf16.gmra.mxu0 %v988
        %v999 = vpop.f32.mrf.mxu0
        %v1000 = vadd.f32 %v982, %v999
        %v1001 = vpop.f32.mrf.mxu0
        %v1002 = vadd.f32 %v983, %v1001
        %1003 = vdwg.mxu0
        %v1004 = vpack.c.bf16 %v1002, %v1000
        %v1005 = vld [vmem:[%s2] sm:$0xf]
        %v1006 = vld [vmem:[%s2 + $0x4] sm:$0xf]
        %v1007 = vld [vmem:[%s2 + $0x8] sm:$0xf]
        %v1008 = vld [vmem:[%s2 + $0xc] sm:$0xf]
        %v1009 = vld [vmem:[%s2 + $0x10] sm:$0xf]
        %v1010 = vld [vmem:[%s2 + $0x14] sm:$0xf]
        %v1011 = vld [vmem:[%s2 + $0x18] sm:$0xf]
        %v1012 = vld [vmem:[%s2 + $0x1c] sm:$0xf]
        %v1013 = vld [vmem:[%s3] sm:$0x1]
        %v1015 = vperm.slane %v1013, 0
        %v1025 = vunpack.c.l.b16 %v1005
        %v1026 = vunpack.c.l.b16 %v1006
        %v1027 = vunpack.c.l.b16 %v1007
        %v1028 = vunpack.c.l.b16 %v1008
        %v1029 = vunpack.c.l.b16 %v1009
        %v1030 = vunpack.c.l.b16 %v1010
        %v1031 = vunpack.c.l.b16 %v1011
        %v1032 = vunpack.c.l.b16 %v1012
        %v1033 = vpack.c.b16 %v1026, %v1025
        %v1034 = vpack.c.b16 %v1028, %v1027
        %v1035 = vpack.c.b16 %v1030, %v1029
        %v1036 = vpack.c.b16 %v1032, %v1031
        %v1042 = vsel %vm986, %v1004, 0
        %1044 = vmatpush.bf16.msra.mxu0 0
        %1045 = vmatpush.bf16.msra.mxu0 0
        %1046 = vmatpush.bf16.msra.mxu0 0
        %1047 = vmatpush.bf16.msra.mxu0 0
        %1048 = vmatpush.bf16.msra.mxu0 %v1036
        %1049 = vmatpush.bf16.msra.mxu0 %v1035
        %1050 = vmatpush.bf16.msra.mxu0 %v1034
        %1051 = vmatpush.bf16.msra.mxu0 %v1033
        %1052 = vmatmul.bf16.gmra.mxu0 %v1042
        %v1053 = vpop.f32.mrf.mxu0
        %v1054 = vadd.f32 %v1015, %v1053
        %v1055 = vpop.f32.mrf.mxu0
        %v1056 = vadd.f32 %v1015, %v1055
        %1057 = vdwg.mxu0
        %1058 = vst.msk [vmem:[%s305] sm:$0xff] %vm331, %v1054
        %1059 = vst.msk [vmem:[%s305 + $0x8] sm:$0xff] %vm331, %v1056
        %s1060 = sand.u32 %s183, 1
        %s1061 = scalar_lea.sflag [#allocation5], %s1060
        %s1062 = sand.u32 %s183, 1
        %s1063 = smul.addr %s1062, 16
        %s1064 = scalar_lea.vmem [#allocation8], %s1063
        // Predicated region
        $region57: #{tpu_custom_call.1} parent=47 // pred_check
          %p1065 = pneg %p193
        $region58: #{tpu_custom_call.1} parent=47 // pred_check_branch
          %1067 = sbr.rel (%p1065) target = $region60
        $region59: #{tpu_custom_call.1} parent=47 // pred_region
          %1069 = vsyncadd %s1061, 0
          %s1070 = smul.addr %s23, 2
          %s1071 = smul.addr %s1070, 8
          %s1072 = scalar_lea.hbm %s7, %s1071
          %s1073 = sshll.u32 %s1064, 4
          %s1074 = int_to_ptr.vmem [resolvable:$true] %s1073
          %s1075 = sshll.u32 %s1072, 4
          %s1076 = int_to_ptr.hbm [resolvable:$true] %s1075
          %1081 = dma.vmem_to_hbm [thread:$0]  %s1074, 256, %s1076, %s1061, 128, 128, 8
        $region60: #{tpu_custom_call.1} parent=47 // pred_fallthru
          _
      $region48: #{tpu_custom_call.1} parent=5 // pred_fallthru
        _
      %p1082 = scmp.le.s32.totalorder 2, %s18
      // Predicated region
      $region61: #{tpu_custom_call.1} parent=5 // pred_check
        %p1083 = pneg %p1082
      $region62: #{tpu_custom_call.1} parent=5 // pred_check_branch
        %1085 = sbr.rel (%p1083) target = $region64
      $region63: #{tpu_custom_call.1} parent=5 // pred_region
        %s1086 = ssub.s32 %s18, 2
        // Predicated region
        $region65: #{tpu_custom_call.1} parent=63 // pred_check
          %p1087 = pneg %p199
        $region66: #{tpu_custom_call.1} parent=63 // pred_check_branch
          %1089 = sbr.rel (%p1087) target = $region68
        $region67: #{tpu_custom_call.1} parent=63 // pred_region
          %s1090 = sand.u32 %s184, 1
          %s1091 = scalar_lea.sflag [#allocation5], %s1090
          %s1092 = sand.u32 %s184, 1
          %s1093 = smul.addr %s1092, 16
          %s1094 = scalar_lea.vmem [#allocation8], %s1093
          %1096 = dma.done %s1091, 256
        $region68: #{tpu_custom_call.1} parent=63 // pred_fallthru
          _
      $region64: #{tpu_custom_call.1} parent=5 // pred_fallthru
        _
    $region6: #{tpu_custom_call.1} parent=1 // loop_footer
      %s22 = sadd.s32 1, %s18
    $region7: #{tpu_custom_call.1} parent=1 // loop_footer_branch
      %17 = sbr.rel target = $region3
    $region8: #{tpu_custom_call.1} parent=1 // loop_exit
      _
    %1097 = vsyncpa [#allocation4], 1
    %s1098 = scalar_lea.sflag [#allocation4], 1
    %1099 = vsyncpa %s1098, 1
    %1100 = vsyncpa [#allocation7], 1
    %1101 = vsyncpa [#allocation5], 1
    %s1102 = scalar_lea.sflag [#allocation5], 1
    %1103 = vsyncpa %s1102, 1

</llo_original>
